<compile_context>
chip_gen: v5e
topology: v5e:2x2
jax: 0.10.0
libtpu: 0.0.40
codegen_flags: <defaults>
</compile_context>

<pallas_src>
import functools

import jax
import jax.numpy as jnp
import numpy as np
from jax import lax
from jax.experimental import pallas as pl
from jax.experimental.pallas import tpu as pltpu


# -----------------------------------------------------------------------------
# In-kernel helpers
# -----------------------------------------------------------------------------
def _dw3x3(pad_ref, x_sp, w_taps, stride):
    """3x3 depthwise conv, padding=1, stride in {1,2}.

    In-kernel spatial layout is (A, B, C) = (image-W, image-H, channels); the
    tap weights are pre-transposed on the host to match.

    x_sp:    (A, B, C) f32 value.
    pad_ref: VMEM scratch (A+2, B+2, C) used for the zero halo.
    w_taps:  (3, 3, C) value (BN scale folded in, spatial dims pre-swapped).
    Returns  (Ao, Bo, C) f32 (bias NOT added).
    """
    A, B, C = x_sp.shape
    Ao = (A - 1) // stride + 1
    Bo = (B - 1) // stride + 1

    # Zero only the four 1-wide border strips; the interior is fully
    # overwritten below (robust under megacore 'parallel' batch sharding).
    pad_ref[pl.ds(0, 1), :, :] = jnp.zeros((1, B + 2, C), jnp.float32)
    pad_ref[pl.ds(A + 1, 1), :, :] = jnp.zeros((1, B + 2, C), jnp.float32)
    pad_ref[:, pl.ds(0, 1), :] = jnp.zeros((A + 2, 1, C), jnp.float32)
    pad_ref[:, pl.ds(B + 1, 1), :] = jnp.zeros((A + 2, 1, C), jnp.float32)
    pad_ref[pl.ds(1, A), pl.ds(1, B), :] = x_sp

    acc = jnp.zeros((Ao, Bo, C), jnp.float32)
    for ka in range(3):                       # static unroll of the 9 taps
        for kb in range(3):
            if stride == 1:
                tap = pad_ref[pl.ds(ka, A), pl.ds(kb, B), :]
            else:
                # Strided slice: only the (Ao, Bo) output positions are read.
                tap = pad_ref[pl.ds(ka, Ao, stride=2),
                              pl.ds(kb, Bo, stride=2), :]
            acc = acc + tap * w_taps[ka, kb]
    return acc


def _fused_kernel(*refs, stride, A, B, cin, bf):
    """Whole InvertedResidual unit for one batch element.

    In-kernel layout: x is (A, B, cin) with A = image width (major),
    B = image height (sublane), channels on lanes.
    """
    if stride == 2:
        (x_ref, w1d_ref, b1d_ref, wp1_ref, bp1_ref, w2d_ref, b2d_ref,
         wall_ref, bil_ref, o_ref, padx_ref, pady_ref) = refs
    else:
        (x_ref, wp1_ref, bp1_ref, w2d_ref, b2d_ref,
         wall_ref, bil_ref, o_ref, pady_ref) = refs

    Ao = (A - 1) // stride + 1
    Bo = (B - 1) // stride + 1
    out_c = 2 * bf
    R = Ao * Bo

    x = x_ref[0].astype(jnp.float32)                      # (A, B, cin)
    xf = x.reshape(A * B, cin)

    # ---- branch2: 1x1 conv (bf16 MXU operands, f32 acc) + bias + ReLU ------
    y1 = jnp.dot(xf.astype(jnp.bfloat16), wp1_ref[...],
                 preferred_element_type=jnp.float32)
    y1 = jnp.maximum(y1 + bp1_ref[0, :], 0.0)             # (A*B, bf)

    # ---- branch2: 3x3 depthwise conv (stride, pad=1) + folded BN bias ------
    y2 = _dw3x3(pady_ref, y1.reshape(A, B, bf), w2d_ref[...], stride)
    y2 = y2 + b2d_ref[0, :]                               # (Ao, Bo, bf)
    y2f = y2.reshape(R, bf)

    # ---- even-channel operand: branch1 (stride 2) or x passthrough ---------
    if stride == 2:
        z1 = _dw3x3(padx_ref, x, w1d_ref[...], 2) + b1d_ref[0, :]
        ef = z1.reshape(R, cin)                           # (R, cin)
    else:
        ef = xf                                           # (R, cin)

    # ---- single merged final 1x1 matmul: concat along K; concat +
    #      channel_shuffle(2) fused into the host-scattered weight columns ----
    cat = jnp.concatenate([ef, y2f], axis=1).astype(jnp.bfloat16)  # (R, cin+bf)
    res = jnp.dot(cat, wall_ref[...],
                  preferred_element_type=jnp.float32)     # (R, out_c)

    if stride == 2:
        out = jnp.maximum(res + bil_ref[0, :], 0.0)
    else:
        # x1 passthrough (even lanes) must NOT be ReLU'd; only branch2 (odd
        # lanes) gets bias + ReLU.
        relu_all = jnp.maximum(res + bil_ref[0, :], 0.0)
        odd = (lax.broadcasted_iota(jnp.int32, (R, out_c), 1) % 2) == 1
        out = jnp.where(odd, relu_all, res)

    # ---- lane-dense output slab: rows = image-H, lanes pack (image-W, C) ---
    # Result rows are ordered W-major, so contiguous (tile-aligned) sublane
    # slices can be concatenated along lanes into a dense (Bo, Ao*out_c) slab.
    pieces = [out[a * Bo:(a + 1) * Bo, :] for a in range(Ao)]
    dense = jnp.concatenate(pieces, axis=1)               # (Bo, Ao*out_c)
    o_ref[0] = dense.astype(o_ref.dtype)


# -----------------------------------------------------------------------------
# Host-side parameter folding (BN scale -> weights; shuffle -> scattered cols;
# depthwise taps transposed to the in-kernel (W-major, H-sublane) layout)
# -----------------------------------------------------------------------------
def _fold_params(p):
    stride, cin, bf = p["stride"], p["input_c"], p["bf"]
    out_c = 2 * bf
    s1, b1 = p["b2_bn1"]
    s2, b2 = p["b2_bn2"]
    s3, b3 = p["b2_bn3"]

    wp1 = p["b2_pw1_w"] * s1[None, :]                     # (in2, bf)
    if stride == 1:
        # lift to (cin, bf): zero rows for x1 so the kernel can use full x
        wp1_full = jnp.zeros((cin, bf), jnp.float32).at[bf:, :].set(wp1)
    else:
        wp1_full = wp1
    # Depthwise taps: swap the 3x3 spatial dims to match the in-kernel layout.
    w2d = jnp.transpose(p["b2_dw_w"], (1, 0, 2)) * s2[None, None, :]
    wp2 = p["b2_pw2_w"] * s3[None, :]                     # (bf, bf)

    # Merged final 1x1 weight: rows [0:cin] multiply the even-branch operand
    # (branch1 output or x passthrough), rows [cin:cin+bf] multiply branch2;
    # even/odd column scattering fuses concat + channel_shuffle(groups=2).
    w_all = jnp.zeros((cin + bf, out_c), jnp.float32)
    w_all = w_all.at[cin:, 1::2].set(wp2)
    bias_il = jnp.zeros((out_c,), jnp.float32).at[1::2].set(b3)

    f = {
        "wp1": wp1_full.astype(jnp.bfloat16),
        "bp1": b1.reshape(1, bf),
        "w2d": w2d,
        "b2d": b2.reshape(1, bf),
    }
    if stride == 2:
        s1d, b1d = p["b1_bn1"]
        s1p, b1p = p["b1_bn2"]
        f["w1d"] = jnp.transpose(p["b1_dw_w"], (1, 0, 2)) * s1d[None, None, :]
        f["b1d"] = b1d.reshape(1, cin)
        w1p = p["b1_pw_w"] * s1p[None, :]                 # (cin, bf)
        w_all = w_all.at[:cin, 0::2].set(w1p)
        bias_il = bias_il.at[0::2].set(b1p)
    else:
        eye = jnp.eye(bf, dtype=jnp.float32)
        w_all = w_all.at[:bf, 0::2].set(eye)
    f["wall"] = w_all.astype(jnp.bfloat16)
    f["bil"] = bias_il.reshape(1, out_c)
    return f


# -----------------------------------------------------------------------------
# Pallas wrapper: one fused pallas_call for the whole unit
# -----------------------------------------------------------------------------
def inverted_residual_forward(x_nchw, p):
    stride, cin, bf = p["stride"], p["input_c"], p["bf"]
    out_c = 2 * bf
    n, _, H, W = x_nchw.shape
    if stride == 2:
        assert H % 2 == 0 and W % 2 == 0, "stride-2 path assumes even H, W"
    # NCHW -> (n, W, H, C): image-W major, image-H sublane, channels on lanes.
    x = jnp.transpose(x_nchw, (0, 3, 2, 1)).astype(jnp.float32)
    A, B = W, H
    Ao = (A - 1) // stride + 1                            # = Wo
    Bo = (B - 1) // stride + 1                            # = Ho
    f = _fold_params(p)

    def full(shape):
        return pl.BlockSpec(shape, lambda b, _s=shape: (0,) * len(_s))

    x_spec = pl.BlockSpec((1, A, B, cin), lambda b: (b, 0, 0, 0))
    # Lane-dense output: (n, Ho, Wo*out_c) -> 128-lane rows at these shapes.
    o_spec = pl.BlockSpec((1, Bo, Ao * out_c), lambda b: (b, 0, 0))

    if stride == 2:
        inputs = (x, f["w1d"], f["b1d"], f["wp1"], f["bp1"], f["w2d"],
                  f["b2d"], f["wall"], f["bil"])
        in_specs = [x_spec,
                    full((3, 3, cin)), full((1, cin)),
                    full((cin, bf)), full((1, bf)),
                    full((3, 3, bf)), full((1, bf)),
                    full((cin + bf, out_c)), full((1, out_c))]
        scratch = [pltpu.VMEM((A + 2, B + 2, cin), jnp.float32),
                   pltpu.VMEM((A + 2, B + 2, bf), jnp.float32)]
    else:
        inputs = (x, f["wp1"], f["bp1"], f["w2d"], f["b2d"],
                  f["wall"], f["bil"])
        in_specs = [x_spec,
                    full((cin, bf)), full((1, bf)),
                    full((3, 3, bf)), full((1, bf)),
                    full((cin + bf, out_c)), full((1, out_c))]
        scratch = [pltpu.VMEM((A + 2, B + 2, bf), jnp.float32)]

    flops = (2 * n * A * B * cin * bf                    # branch2 pw1
             + 2 * n * Ao * Bo * 9 * bf                  # branch2 dw
             + 2 * n * Ao * Bo * (cin + bf) * out_c)     # merged final 1x1
    if stride == 2:
        flops += 2 * n * Ao * Bo * 9 * cin               # branch1 dw
    bytes_accessed = 4 * (n * A * B * cin + n * Ao * Bo * out_c)

    out = pl.pallas_call(
        functools.partial(_fused_kernel, stride=stride, A=A, B=B, cin=cin, bf=bf),
        out_shape=jax.ShapeDtypeStruct((n, Bo, Ao * out_c), jnp.float32),
        grid_spec=pltpu.PrefetchScalarGridSpec(
            num_scalar_prefetch=0,
            grid=(n,),
            in_specs=in_specs,
            out_specs=o_spec,
            scratch_shapes=scratch),
        compiler_params=pltpu.CompilerParams(dimension_semantics=("parallel",)),
        cost_estimate=pl.CostEstimate(flops=flops, transcendentals=0,
                                      bytes_accessed=bytes_accessed),
    )(*inputs)

    out_nhwc = out.reshape(n, Bo, Ao, out_c)             # (n, Ho, Wo, out_c)
    return jnp.transpose(out_nhwc, (0, 3, 1, 2))         # NHWC -> NCHW


# -----------------------------------------------------------------------------
# Parameter init (inference-mode BN folded into scale/bias)
# -----------------------------------------------------------------------------
def _make_bn(key, c):
    k1, k2, k3, k4 = jax.random.split(key, 4)
    gamma = jax.random.uniform(k1, (c,), jnp.float32, 0.5, 1.5)
    beta = 0.1 * jax.random.normal(k2, (c,), jnp.float32)
    mean = 0.1 * jax.random.normal(k3, (c,), jnp.float32)
    var = jax.random.uniform(k4, (c,), jnp.float32, 0.5, 1.5)
    eps = 1e-5
    scale = gamma / jnp.sqrt(var + eps)
    bias = beta - mean * scale
    return scale, bias


def init_inverted_residual(key, input_c, output_c, stride):
    assert stride in (1, 2)
    assert output_c % 2 == 0
    bf = output_c // 2
    assert stride != 1 or input_c == bf * 2
    ks = jax.random.split(key, 12)
    p = {"stride": stride, "input_c": input_c, "output_c": output_c, "bf": bf}
    if stride == 2:
        p["b1_dw_w"] = 0.1 * jax.random.normal(ks[0], (3, 3, input_c), jnp.float32)
        p["b1_bn1"] = _make_bn(ks[1], input_c)
        p["b1_pw_w"] = 0.1 * jax.random.normal(ks[2], (input_c, bf), jnp.float32)
        p["b1_bn2"] = _make_bn(ks[3], bf)
    in2 = input_c if stride > 1 else bf
    p["b2_pw1_w"] = 0.1 * jax.random.normal(ks[4], (in2, bf), jnp.float32)
    p["b2_bn1"] = _make_bn(ks[5], bf)
    p["b2_dw_w"] = 0.1 * jax.random.normal(ks[6], (3, 3, bf), jnp.float32)
    p["b2_bn2"] = _make_bn(ks[7], bf)
    p["b2_pw2_w"] = 0.1 * jax.random.normal(ks[8], (bf, bf), jnp.float32)
    p["b2_bn3"] = _make_bn(ks[9], bf)
    return p


# -----------------------------------------------------------------------------
# Pure-JAX reference (unfolded, torch-faithful structure) for correctness
# -----------------------------------------------------------------------------
def _ref_pw(x, w, scale, bias, relu):
    y = jnp.einsum("nhwc,cd->nhwd", x, w,
                   precision=jax.lax.Precision.HIGHEST) * scale + bias
    return jnp.maximum(y, 0.0) if relu else y


def _ref_dw(x, w, scale, bias, stride):
    n, h, wd, c = x.shape
    h_out = (h - 1) // stride + 1
    w_out = (wd - 1) // stride + 1
    xp = jnp.pad(x, ((0, 0), (1, 1), (1, 1), (0, 0)))
    acc = jnp.zeros((n, h_out, w_out, c), jnp.float32)
    for kh in range(3):
        for kw in range(3):
            patch = xp[:, kh:kh + (h_out - 1) * stride + 1:stride,
                       kw:kw + (w_out - 1) * stride + 1:stride, :]
            acc = acc + patch * w[kh, kw]
    return acc * scale + bias


def inverted_residual_forward_ref(x_nchw, p):
    stride = p["stride"]
    x = jnp.transpose(x_nchw, (0, 2, 3, 1))
    if stride == 1:
        c = x.shape[-1]
        x1, x2 = x[..., : c // 2], x[..., c // 2:]
        out1, b2_in = x1, x2
    else:
        y = _ref_dw(x, p["b1_dw_w"], p["b1_bn1"][0], p["b1_bn1"][1], stride)
        out1 = _ref_pw(y, p["b1_pw_w"], p["b1_bn2"][0], p["b1_bn2"][1], True)
        b2_in = x
    y = _ref_pw(b2_in, p["b2_pw1_w"], p["b2_bn1"][0], p["b2_bn1"][1], True)
    y = _ref_dw(y, p["b2_dw_w"], p["b2_bn2"][0], p["b2_bn2"][1], stride)
    b2 = _ref_pw(y, p["b2_pw2_w"], p["b2_bn3"][0], p["b2_bn3"][1], True)
    n, ho, wo, cb = out1.shape
    out = jnp.stack([out1, b2], axis=-1).reshape(n, ho, wo, 2 * cb)
    return jnp.transpose(out, (0, 3, 1, 2))


# -----------------------------------------------------------------------------
if __name__ == "__main__":
    key = jax.random.PRNGKey(0)
    k_x, k_p1, k_p2 = jax.random.split(key, 3)
    batch, hw = 2, 16

    x = jax.random.normal(k_x, (batch, 8, hw, hw), jnp.float32)   # NCHW

    # Tolerance note: BN scales are folded into the conv weights and the 1x1
    # matmuls use bf16 MXU operands (f32 accumulation) in the kernel, while
    # the reference keeps everything f32 with scale-after-matmul; the combined
    # reassociation + bf16 rounding sits at the ~1e-2 absolute level here.
    TOL = dict(rtol=2e-2, atol=2e-2)

    # stride=1 unit: 8 -> 8 channels
    p1 = init_inverted_residual(k_p1, 8, 8, 1)
    out1 = jax.block_until_ready(inverted_residual_forward(x, p1))
    ref1 = jax.block_until_ready(inverted_residual_forward_ref(x, p1))
    assert out1.shape == (batch, 8, hw, hw), out1.shape
    np.testing.assert_allclose(np.asarray(out1), np.asarray(ref1), **TOL)

    # stride=2 unit: 8 -> 16 channels, spatial 16 -> 8
    p2 = init_inverted_residual(k_p2, 8, 16, 2)
    out2 = jax.block_until_ready(inverted_residual_forward(x, p2))
    ref2 = jax.block_until_ready(inverted_residual_forward_ref(x, p2))
    assert out2.shape == (batch, 16, hw // 2, hw // 2), out2.shape
    np.testing.assert_allclose(np.asarray(out2), np.asarray(ref2), **TOL)

    print("KERNEL_OK")
</pallas_src>

<mosaic_0001>
module attributes {stable_mosaic.version = 11 : i64} {
  func.func @_fused_kernel(%arg0: i32, %arg1: memref<1x16x16x8xf32, #tpu.memory_space<vmem>>, %arg2: memref<8x4xbf16, #tpu.memory_space<vmem>>, %arg3: memref<1x4xf32, #tpu.memory_space<vmem>>, %arg4: memref<3x3x4xf32, #tpu.memory_space<vmem>>, %arg5: memref<1x4xf32, #tpu.memory_space<vmem>>, %arg6: memref<12x8xbf16, #tpu.memory_space<vmem>>, %arg7: memref<1x8xf32, #tpu.memory_space<vmem>>, %arg8: memref<1x16x128xf32, #tpu.memory_space<vmem>>, %arg9: memref<18x18x4xf32, #tpu.memory_space<vmem>>) attributes {dimension_semantics = [#tpu.dimension_semantics<parallel>], iteration_bounds = array<i64: 2>, scalar_prefetch = 0 : i64, scratch_operands = 1 : i64, tpu.core_type = #tpu.core_type<tc>, window_params = [{transform_indices = @transform_0, window_bounds = array<i64: 1, 16, 16, 8>}, {pipeline_mode = #tpu.pipeline_mode<synchronous>, transform_indices = @transform_1, window_bounds = array<i64: 8, 4>}, {pipeline_mode = #tpu.pipeline_mode<synchronous>, transform_indices = @transform_2, window_bounds = array<i64: 1, 4>}, {pipeline_mode = #tpu.pipeline_mode<synchronous>, transform_indices = @transform_3, window_bounds = array<i64: 3, 3, 4>}, {pipeline_mode = #tpu.pipeline_mode<synchronous>, transform_indices = @transform_4, window_bounds = array<i64: 1, 4>}, {pipeline_mode = #tpu.pipeline_mode<synchronous>, transform_indices = @transform_5, window_bounds = array<i64: 12, 8>}, {pipeline_mode = #tpu.pipeline_mode<synchronous>, transform_indices = @transform_6, window_bounds = array<i64: 1, 8>}, {transform_indices = @transform_7, window_bounds = array<i64: 1, 16, 128>}]} {
    %c0 = arith.constant 0 : index
    %c0_0 = arith.constant 0 : index
    %c0_1 = arith.constant 0 : index
    %c0_2 = arith.constant 0 : index
    %0 = vector.load %arg1[%c0, %c0_0, %c0_1, %c0_2] : memref<1x16x16x8xf32, #tpu.memory_space<vmem>>, vector<1x16x16x8xf32>
    %1 = vector.shape_cast %0 : vector<1x16x16x8xf32> to vector<16x16x8xf32>
    %2 = vector.shape_cast %1 : vector<16x16x8xf32> to vector<256x8xf32>
    %3 = arith.truncf %2 : vector<256x8xf32> to vector<256x8xbf16>
    %c0_3 = arith.constant 0 : index
    %c0_4 = arith.constant 0 : index
    %4 = vector.load %arg2[%c0_3, %c0_4] : memref<8x4xbf16, #tpu.memory_space<vmem>>, vector<8x4xbf16>
    %cst = arith.constant dense<0.000000e+00> : vector<256x4xf32>
    %5 = tpu.matmul %3, %4, %cst {dimension_numbers = #tpu.dot_dimension_numbers<[1], [0], [0], [1], [0, 0, 1, 1], [], []>} : vector<256x8xbf16>, vector<8x4xbf16>, vector<256x4xf32> -> vector<256x4xf32>
    %c0_5 = arith.constant 0 : index
    %c0_6 = arith.constant 0 : index
    %6 = vector.load %arg3[%c0_5, %c0_6] : memref<1x4xf32, #tpu.memory_space<vmem>>, vector<1x4xf32>
    %7 = vector.shape_cast %6 : vector<1x4xf32> to vector<4xf32>
    %8 = vector.shape_cast %7 : vector<4xf32> to vector<1x4xf32>
    %9 = vector.broadcast %8 : vector<1x4xf32> to vector<256x4xf32>
    %10 = arith.addf %5, %9 : vector<256x4xf32>
    %cst_7 = arith.constant 0.000000e+00 : f32
    %11 = vector.broadcast %cst_7 : f32 to vector<256x4xf32>
    %12 = arith.maximumf %10, %11 : vector<256x4xf32>
    %13 = vector.shape_cast %12 : vector<256x4xf32> to vector<16x16x4xf32>
    %c0_8 = arith.constant 0 : index
    %c0_9 = arith.constant 0 : index
    %c0_10 = arith.constant 0 : index
    %14 = vector.load %arg4[%c0_8, %c0_9, %c0_10] : memref<3x3x4xf32, #tpu.memory_space<vmem>>, vector<3x3x4xf32>
    %cst_11 = arith.constant 0.000000e+00 : f32
    %15 = vector.broadcast %cst_11 : f32 to vector<1x18x4xf32>
    %c0_12 = arith.constant 0 : index
    %c0_13 = arith.constant 0 : index
    %c0_14 = arith.constant 0 : index
    %16 = vector.load %arg9[%c0_12, %c0_13, %c0_14] : memref<18x18x4xf32, #tpu.memory_space<vmem>>, vector<1x18x4xf32>
    tpu.vector_store %arg9[%c0_12, %c0_13, %c0_14], %15 {strides = array<i32>} : memref<18x18x4xf32, #tpu.memory_space<vmem>>, vector<1x18x4xf32>,
    %cst_15 = arith.constant 0.000000e+00 : f32
    %17 = vector.broadcast %cst_15 : f32 to vector<1x18x4xf32>
    %c17 = arith.constant 17 : index
    %c0_16 = arith.constant 0 : index
    %c0_17 = arith.constant 0 : index
    %18 = vector.load %arg9[%c17, %c0_16, %c0_17] : memref<18x18x4xf32, #tpu.memory_space<vmem>>, vector<1x18x4xf32>
    tpu.vector_store %arg9[%c17, %c0_16, %c0_17], %17 {strides = array<i32>} : memref<18x18x4xf32, #tpu.memory_space<vmem>>, vector<1x18x4xf32>,
    %cst_18 = arith.constant 0.000000e+00 : f32
    %19 = vector.broadcast %cst_18 : f32 to vector<18x1x4xf32>
    %c0_19 = arith.constant 0 : index
    %c0_20 = arith.constant 0 : index
    %c0_21 = arith.constant 0 : index
    %20 = vector.load %arg9[%c0_19, %c0_20, %c0_21] : memref<18x18x4xf32, #tpu.memory_space<vmem>>, vector<18x1x4xf32>
    tpu.vector_store %arg9[%c0_19, %c0_20, %c0_21], %19 {strides = array<i32>} : memref<18x18x4xf32, #tpu.memory_space<vmem>>, vector<18x1x4xf32>,
    %cst_22 = arith.constant 0.000000e+00 : f32
    %21 = vector.broadcast %cst_22 : f32 to vector<18x1x4xf32>
    %c0_23 = arith.constant 0 : index
    %c17_24 = arith.constant 17 : index
    %c0_25 = arith.constant 0 : index
    %22 = vector.load %arg9[%c0_23, %c17_24, %c0_25] : memref<18x18x4xf32, #tpu.memory_space<vmem>>, vector<18x1x4xf32>
    tpu.vector_store %arg9[%c0_23, %c17_24, %c0_25], %21 {strides = array<i32>} : memref<18x18x4xf32, #tpu.memory_space<vmem>>, vector<18x1x4xf32>,
    %c1 = arith.constant 1 : index
    %c1_26 = arith.constant 1 : index
    %c0_27 = arith.constant 0 : index
    %23 = vector.load %arg9[%c1, %c1_26, %c0_27] : memref<18x18x4xf32, #tpu.memory_space<vmem>>, vector<16x16x4xf32>
    tpu.vector_store %arg9[%c1, %c1_26, %c0_27], %13 {strides = array<i32>} : memref<18x18x4xf32, #tpu.memory_space<vmem>>, vector<16x16x4xf32>,
    %cst_28 = arith.constant 0.000000e+00 : f32
    %24 = vector.broadcast %cst_28 : f32 to vector<16x16x4xf32>
    %c0_29 = arith.constant 0 : index
    %c0_30 = arith.constant 0 : index
    %c0_31 = arith.constant 0 : index
    %25 = vector.load %arg9[%c0_29, %c0_30, %c0_31] : memref<18x18x4xf32, #tpu.memory_space<vmem>>, vector<16x16x4xf32>
    %26 = vector.extract_strided_slice %14 {offsets = [0, 0, 0], sizes = [1, 1, 4], strides = [1, 1, 1]} : vector<3x3x4xf32> to vector<1x1x4xf32>
    %27 = vector.shape_cast %26 : vector<1x1x4xf32> to vector<4xf32>
    %28 = vector.shape_cast %27 : vector<4xf32> to vector<1x1x4xf32>
    %29 = vector.broadcast %28 : vector<1x1x4xf32> to vector<16x16x4xf32>
    %30 = arith.mulf %25, %29 : vector<16x16x4xf32>
    %31 = arith.addf %24, %30 : vector<16x16x4xf32>
    %c0_32 = arith.constant 0 : index
    %c1_33 = arith.constant 1 : index
    %c0_34 = arith.constant 0 : index
    %32 = vector.load %arg9[%c0_32, %c1_33, %c0_34] : memref<18x18x4xf32, #tpu.memory_space<vmem>>, vector<16x16x4xf32>
    %33 = vector.extract_strided_slice %14 {offsets = [0, 1, 0], sizes = [1, 1, 4], strides = [1, 1, 1]} : vector<3x3x4xf32> to vector<1x1x4xf32>
    %34 = vector.shape_cast %33 : vector<1x1x4xf32> to vector<4xf32>
    %35 = vector.shape_cast %34 : vector<4xf32> to vector<1x1x4xf32>
    %36 = vector.broadcast %35 : vector<1x1x4xf32> to vector<16x16x4xf32>
    %37 = arith.mulf %32, %36 : vector<16x16x4xf32>
    %38 = arith.addf %31, %37 : vector<16x16x4xf32>
    %c0_35 = arith.constant 0 : index
    %c2 = arith.constant 2 : index
    %c0_36 = arith.constant 0 : index
    %39 = vector.load %arg9[%c0_35, %c2, %c0_36] : memref<18x18x4xf32, #tpu.memory_space<vmem>>, vector<16x16x4xf32>
    %40 = vector.extract_strided_slice %14 {offsets = [0, 2, 0], sizes = [1, 1, 4], strides = [1, 1, 1]} : vector<3x3x4xf32> to vector<1x1x4xf32>
    %41 = vector.shape_cast %40 : vector<1x1x4xf32> to vector<4xf32>
    %42 = vector.shape_cast %41 : vector<4xf32> to vector<1x1x4xf32>
    %43 = vector.broadcast %42 : vector<1x1x4xf32> to vector<16x16x4xf32>
    %44 = arith.mulf %39, %43 : vector<16x16x4xf32>
    %45 = arith.addf %38, %44 : vector<16x16x4xf32>
    %c1_37 = arith.constant 1 : index
    %c0_38 = arith.constant 0 : index
    %c0_39 = arith.constant 0 : index
    %46 = vector.load %arg9[%c1_37, %c0_38, %c0_39] : memref<18x18x4xf32, #tpu.memory_space<vmem>>, vector<16x16x4xf32>
    %47 = vector.extract_strided_slice %14 {offsets = [1, 0, 0], sizes = [1, 1, 4], strides = [1, 1, 1]} : vector<3x3x4xf32> to vector<1x1x4xf32>
    %48 = vector.shape_cast %47 : vector<1x1x4xf32> to vector<4xf32>
    %49 = vector.shape_cast %48 : vector<4xf32> to vector<1x1x4xf32>
    %50 = vector.broadcast %49 : vector<1x1x4xf32> to vector<16x16x4xf32>
    %51 = arith.mulf %46, %50 : vector<16x16x4xf32>
    %52 = arith.addf %45, %51 : vector<16x16x4xf32>
    %c1_40 = arith.constant 1 : index
    %c1_41 = arith.constant 1 : index
    %c0_42 = arith.constant 0 : index
    %53 = vector.load %arg9[%c1_40, %c1_41, %c0_42] : memref<18x18x4xf32, #tpu.memory_space<vmem>>, vector<16x16x4xf32>
    %54 = vector.extract_strided_slice %14 {offsets = [1, 1, 0], sizes = [1, 1, 4], strides = [1, 1, 1]} : vector<3x3x4xf32> to vector<1x1x4xf32>
    %55 = vector.shape_cast %54 : vector<1x1x4xf32> to vector<4xf32>
    %56 = vector.shape_cast %55 : vector<4xf32> to vector<1x1x4xf32>
    %57 = vector.broadcast %56 : vector<1x1x4xf32> to vector<16x16x4xf32>
    %58 = arith.mulf %53, %57 : vector<16x16x4xf32>
    %59 = arith.addf %52, %58 : vector<16x16x4xf32>
    %c1_43 = arith.constant 1 : index
    %c2_44 = arith.constant 2 : index
    %c0_45 = arith.constant 0 : index
    %60 = vector.load %arg9[%c1_43, %c2_44, %c0_45] : memref<18x18x4xf32, #tpu.memory_space<vmem>>, vector<16x16x4xf32>
    %61 = vector.extract_strided_slice %14 {offsets = [1, 2, 0], sizes = [1, 1, 4], strides = [1, 1, 1]} : vector<3x3x4xf32> to vector<1x1x4xf32>
    %62 = vector.shape_cast %61 : vector<1x1x4xf32> to vector<4xf32>
    %63 = vector.shape_cast %62 : vector<4xf32> to vector<1x1x4xf32>
    %64 = vector.broadcast %63 : vector<1x1x4xf32> to vector<16x16x4xf32>
    %65 = arith.mulf %60, %64 : vector<16x16x4xf32>
    %66 = arith.addf %59, %65 : vector<16x16x4xf32>
    %c2_46 = arith.constant 2 : index
    %c0_47 = arith.constant 0 : index
    %c0_48 = arith.constant 0 : index
    %67 = vector.load %arg9[%c2_46, %c0_47, %c0_48] : memref<18x18x4xf32, #tpu.memory_space<vmem>>, vector<16x16x4xf32>
    %68 = vector.extract_strided_slice %14 {offsets = [2, 0, 0], sizes = [1, 1, 4], strides = [1, 1, 1]} : vector<3x3x4xf32> to vector<1x1x4xf32>
    %69 = vector.shape_cast %68 : vector<1x1x4xf32> to vector<4xf32>
    %70 = vector.shape_cast %69 : vector<4xf32> to vector<1x1x4xf32>
    %71 = vector.broadcast %70 : vector<1x1x4xf32> to vector<16x16x4xf32>
    %72 = arith.mulf %67, %71 : vector<16x16x4xf32>
    %73 = arith.addf %66, %72 : vector<16x16x4xf32>
    %c2_49 = arith.constant 2 : index
    %c1_50 = arith.constant 1 : index
    %c0_51 = arith.constant 0 : index
    %74 = vector.load %arg9[%c2_49, %c1_50, %c0_51] : memref<18x18x4xf32, #tpu.memory_space<vmem>>, vector<16x16x4xf32>
    %75 = vector.extract_strided_slice %14 {offsets = [2, 1, 0], sizes = [1, 1, 4], strides = [1, 1, 1]} : vector<3x3x4xf32> to vector<1x1x4xf32>
    %76 = vector.shape_cast %75 : vector<1x1x4xf32> to vector<4xf32>
    %77 = vector.shape_cast %76 : vector<4xf32> to vector<1x1x4xf32>
    %78 = vector.broadcast %77 : vector<1x1x4xf32> to vector<16x16x4xf32>
    %79 = arith.mulf %74, %78 : vector<16x16x4xf32>
    %80 = arith.addf %73, %79 : vector<16x16x4xf32>
    %c2_52 = arith.constant 2 : index
    %c2_53 = arith.constant 2 : index
    %c0_54 = arith.constant 0 : index
    %81 = vector.load %arg9[%c2_52, %c2_53, %c0_54] : memref<18x18x4xf32, #tpu.memory_space<vmem>>, vector<16x16x4xf32>
    %82 = vector.extract_strided_slice %14 {offsets = [2, 2, 0], sizes = [1, 1, 4], strides = [1, 1, 1]} : vector<3x3x4xf32> to vector<1x1x4xf32>
    %83 = vector.shape_cast %82 : vector<1x1x4xf32> to vector<4xf32>
    %84 = vector.shape_cast %83 : vector<4xf32> to vector<1x1x4xf32>
    %85 = vector.broadcast %84 : vector<1x1x4xf32> to vector<16x16x4xf32>
    %86 = arith.mulf %81, %85 : vector<16x16x4xf32>
    %87 = arith.addf %80, %86 : vector<16x16x4xf32>
    %c0_55 = arith.constant 0 : index
    %c0_56 = arith.constant 0 : index
    %88 = vector.load %arg5[%c0_55, %c0_56] : memref<1x4xf32, #tpu.memory_space<vmem>>, vector<1x4xf32>
    %89 = vector.shape_cast %88 : vector<1x4xf32> to vector<4xf32>
    %90 = vector.shape_cast %89 : vector<4xf32> to vector<1x1x4xf32>
    %91 = vector.broadcast %90 : vector<1x1x4xf32> to vector<16x16x4xf32>
    %92 = arith.addf %87, %91 : vector<16x16x4xf32>
    %93 = vector.shape_cast %92 : vector<16x16x4xf32> to vector<256x4xf32>
    %94 = tpu.concatenate %2, %93 in 1 : vector<256x8xf32>, vector<256x4xf32> -> vector<256x12xf32>
    %95 = arith.truncf %94 : vector<256x12xf32> to vector<256x12xbf16>
    %c0_57 = arith.constant 0 : index
    %c0_58 = arith.constant 0 : index
    %96 = vector.load %arg6[%c0_57, %c0_58] : memref<12x8xbf16, #tpu.memory_space<vmem>>, vector<12x8xbf16>
    %cst_59 = arith.constant dense<0.000000e+00> : vector<256x8xf32>
    %97 = tpu.matmul %95, %96, %cst_59 {dimension_numbers = #tpu.dot_dimension_numbers<[1], [0], [0], [1], [0, 0, 1, 1], [], []>} : vector<256x12xbf16>, vector<12x8xbf16>, vector<256x8xf32> -> vector<256x8xf32>
    %c0_60 = arith.constant 0 : index
    %c0_61 = arith.constant 0 : index
    %98 = vector.load %arg7[%c0_60, %c0_61] : memref<1x8xf32, #tpu.memory_space<vmem>>, vector<1x8xf32>
    %99 = vector.shape_cast %98 : vector<1x8xf32> to vector<8xf32>
    %100 = vector.shape_cast %99 : vector<8xf32> to vector<1x8xf32>
    %101 = vector.broadcast %100 : vector<1x8xf32> to vector<256x8xf32>
    %102 = arith.addf %97, %101 : vector<256x8xf32>
    %cst_62 = arith.constant 0.000000e+00 : f32
    %103 = vector.broadcast %cst_62 : f32 to vector<256x8xf32>
    %104 = arith.maximumf %102, %103 : vector<256x8xf32>
    %105 = tpu.iota {dimensions = array<i32: 1>} : vector<256x8xi32>
    %c2_i32 = arith.constant 2 : i32
    %c0_i32 = arith.constant 0 : i32
    %106 = arith.cmpi eq, %c2_i32, %c0_i32 : i32
    %c1_i32 = arith.constant 1 : i32
    %107 = arith.select %106, %c1_i32, %c2_i32 : i32
    %108 = vector.broadcast %107 : i32 to vector<256x8xi32>
    %109 = arith.remsi %105, %108 : vector<256x8xi32>
    %c0_i32_63 = arith.constant 0 : i32
    %110 = vector.broadcast %c0_i32_63 : i32 to vector<256x8xi32>
    %111 = arith.cmpi ne, %109, %110 : vector<256x8xi32>
    %c0_i32_64 = arith.constant 0 : i32
    %112 = vector.broadcast %c0_i32_64 : i32 to vector<256x8xi32>
    %113 = arith.cmpi slt, %109, %112 : vector<256x8xi32>
    %c0_i32_65 = arith.constant 0 : i32
    %114 = arith.cmpi slt, %107, %c0_i32_65 : i32
    %115 = vector.broadcast %114 : i1 to vector<256x8xi1>
    %116 = vector.broadcast %115 : vector<256x8xi1> to vector<256x8xi1>
    %117 = arith.xori %113, %116 : vector<256x8xi1>
    %118 = arith.andi %117, %111 : vector<256x8xi1>
    %119 = vector.broadcast %107 : i32 to vector<256x8xi32>
    %120 = arith.addi %109, %119 : vector<256x8xi32>
    %121 = arith.select %118, %120, %109 : vector<256x8xi1>, vector<256x8xi32>
    %c1_i32_66 = arith.constant 1 : i32
    %122 = vector.broadcast %c1_i32_66 : i32 to vector<256x8xi32>
    %123 = arith.cmpi eq, %121, %122 : vector<256x8xi32>
    %124 = arith.select %123, %104, %97 : vector<256x8xi1>, vector<256x8xf32>
    %125 = vector.extract_strided_slice %124 {offsets = [0, 0], sizes = [16, 8], strides = [1, 1]} : vector<256x8xf32> to vector<16x8xf32>
    %126 = vector.extract_strided_slice %124 {offsets = [16, 0], sizes = [16, 8], strides = [1, 1]} : vector<256x8xf32> to vector<16x8xf32>
    %127 = vector.extract_strided_slice %124 {offsets = [32, 0], sizes = [16, 8], strides = [1, 1]} : vector<256x8xf32> to vector<16x8xf32>
    %128 = vector.extract_strided_slice %124 {offsets = [48, 0], sizes = [16, 8], strides = [1, 1]} : vector<256x8xf32> to vector<16x8xf32>
    %129 = vector.extract_strided_slice %124 {offsets = [64, 0], sizes = [16, 8], strides = [1, 1]} : vector<256x8xf32> to vector<16x8xf32>
    %130 = vector.extract_strided_slice %124 {offsets = [80, 0], sizes = [16, 8], strides = [1, 1]} : vector<256x8xf32> to vector<16x8xf32>
    %131 = vector.extract_strided_slice %124 {offsets = [96, 0], sizes = [16, 8], strides = [1, 1]} : vector<256x8xf32> to vector<16x8xf32>
    %132 = vector.extract_strided_slice %124 {offsets = [112, 0], sizes = [16, 8], strides = [1, 1]} : vector<256x8xf32> to vector<16x8xf32>
    %133 = vector.extract_strided_slice %124 {offsets = [128, 0], sizes = [16, 8], strides = [1, 1]} : vector<256x8xf32> to vector<16x8xf32>
    %134 = vector.extract_strided_slice %124 {offsets = [144, 0], sizes = [16, 8], strides = [1, 1]} : vector<256x8xf32> to vector<16x8xf32>
    %135 = vector.extract_strided_slice %124 {offsets = [160, 0], sizes = [16, 8], strides = [1, 1]} : vector<256x8xf32> to vector<16x8xf32>
    %136 = vector.extract_strided_slice %124 {offsets = [176, 0], sizes = [16, 8], strides = [1, 1]} : vector<256x8xf32> to vector<16x8xf32>
    %137 = vector.extract_strided_slice %124 {offsets = [192, 0], sizes = [16, 8], strides = [1, 1]} : vector<256x8xf32> to vector<16x8xf32>
    %138 = vector.extract_strided_slice %124 {offsets = [208, 0], sizes = [16, 8], strides = [1, 1]} : vector<256x8xf32> to vector<16x8xf32>
    %139 = vector.extract_strided_slice %124 {offsets = [224, 0], sizes = [16, 8], strides = [1, 1]} : vector<256x8xf32> to vector<16x8xf32>
    %140 = vector.extract_strided_slice %124 {offsets = [240, 0], sizes = [16, 8], strides = [1, 1]} : vector<256x8xf32> to vector<16x8xf32>
    %141 = tpu.concatenate %125, %126, %127, %128, %129, %130, %131, %132, %133, %134, %135, %136, %137, %138, %139, %140 in 1 : vector<16x8xf32>, vector<16x8xf32>, vector<16x8xf32>, vector<16x8xf32>, vector<16x8xf32>, vector<16x8xf32>, vector<16x8xf32>, vector<16x8xf32>, vector<16x8xf32>, vector<16x8xf32>, vector<16x8xf32>, vector<16x8xf32>, vector<16x8xf32>, vector<16x8xf32>, vector<16x8xf32>, vector<16x8xf32> -> vector<16x128xf32>
    %c0_67 = arith.constant 0 : index
    %c0_68 = arith.constant 0 : index
    %c0_69 = arith.constant 0 : index
    %142 = vector.load %arg8[%c0_67, %c0_68, %c0_69] : memref<1x16x128xf32, #tpu.memory_space<vmem>>, vector<1x16x128xf32>
    %143 = vector.shape_cast %142 : vector<1x16x128xf32> to vector<16x128xf32>
    %144 = vector.shape_cast %141 : vector<16x128xf32> to vector<1x16x128xf32>
    tpu.vector_store %arg8[%c0_67, %c0_68, %c0_69], %144 {strides = array<i32>} : memref<1x16x128xf32, #tpu.memory_space<vmem>>, vector<1x16x128xf32>,
    return
  }
  func.func @transform_0(%arg0: i32) -> (i32, i32, i32, i32) {
    %c0_i32 = arith.constant 0 : i32
    %c0_i32_0 = arith.constant 0 : i32
    %c0_i32_1 = arith.constant 0 : i32
    %c0_i32_2 = arith.constant 0 : i32
    return %arg0, %c0_i32, %c0_i32_0, %c0_i32_1 : i32, i32, i32, i32
  }
  func.func @transform_1(%arg0: i32) -> (i32, i32) {
    %c0_i32 = arith.constant 0 : i32
    %c0_i32_0 = arith.constant 0 : i32
    %c0_i32_1 = arith.constant 0 : i32
    return %c0_i32, %c0_i32_0 : i32, i32
  }
  func.func @transform_2(%arg0: i32) -> (i32, i32) {
    %c0_i32 = arith.constant 0 : i32
    %c0_i32_0 = arith.constant 0 : i32
    %c0_i32_1 = arith.constant 0 : i32
    return %c0_i32, %c0_i32_0 : i32, i32
  }
  func.func @transform_3(%arg0: i32) -> (i32, i32, i32) {
    %c0_i32 = arith.constant 0 : i32
    %c0_i32_0 = arith.constant 0 : i32
    %c0_i32_1 = arith.constant 0 : i32
    %c0_i32_2 = arith.constant 0 : i32
    return %c0_i32, %c0_i32_0, %c0_i32_1 : i32, i32, i32
  }
  func.func @transform_4(%arg0: i32) -> (i32, i32) {
    %c0_i32 = arith.constant 0 : i32
    %c0_i32_0 = arith.constant 0 : i32
    %c0_i32_1 = arith.constant 0 : i32
    return %c0_i32, %c0_i32_0 : i32, i32
  }
  func.func @transform_5(%arg0: i32) -> (i32, i32) {
    %c0_i32 = arith.constant 0 : i32
    %c0_i32_0 = arith.constant 0 : i32
    %c0_i32_1 = arith.constant 0 : i32
    return %c0_i32, %c0_i32_0 : i32, i32
  }
  func.func @transform_6(%arg0: i32) -> (i32, i32) {
    %c0_i32 = arith.constant 0 : i32
    %c0_i32_0 = arith.constant 0 : i32
    %c0_i32_1 = arith.constant 0 : i32
    return %c0_i32, %c0_i32_0 : i32, i32
  }
  func.func @transform_7(%arg0: i32) -> (i32, i32, i32) {
    %c0_i32 = arith.constant 0 : i32
    %c0_i32_0 = arith.constant 0 : i32
    %c0_i32_1 = arith.constant 0 : i32
    return %arg0, %c0_i32, %c0_i32_0 : i32, i32, i32
  }
}

</mosaic_0001>

<llo_original>
// kernel: tpu_custom_call.1
$region0: #{tpu_custom_call.1}
  #allocation0 [shape = 'u32[]', space=smem, size = 0x4, offset = 0x4, fixed_abs, tag = 'smem constant byte address 0x4 - core index']
  #allocation1 [shape = 'u32[72,128]{1,0:T(1,128)}', space=vmem, size = 0x9000, scoped, tag = 'internal scratch']
  #allocation2 [shape = 'f32[18,18,4]{2,1,0:T(8,128)}', space=vmem, size = 0x36000, scoped, tag = 'scratch operand']
  %s0 = inlined_call_operand.vmem [shape: f32[2,16,16,8], index: 0, kind: input, shape index: {}]
  %s1 = inlined_call_operand.vmem [shape: bf16[8,4], index: 1, kind: input, shape index: {}]
  %s2 = inlined_call_operand.vmem [shape: f32[1,4], index: 2, kind: input, shape index: {}]
  %s3 = inlined_call_operand.vmem [shape: f32[3,3,4], index: 3, kind: input, shape index: {}]
  %s4 = inlined_call_operand.vmem [shape: f32[1,4], index: 4, kind: input, shape index: {}]
  %s5 = inlined_call_operand.vmem [shape: bf16[12,8], index: 5, kind: input, shape index: {}]
  %s6 = inlined_call_operand.vmem [shape: f32[1,8], index: 6, kind: input, shape index: {}]
  %s7 = inlined_call_operand.hbm [shape: f32[2,16,128], index: 7, kind: output, shape index: {}]
  %s8 = sld [smem:[#allocation0]]
  $region61: #{tpu_custom_call.1} parent=0
    _
  %s10 = ssub.s32 1, %s8
  %s11 = scalar_select 0, %s10, %s8
  $region1: #{tpu_custom_call.1} parent=0
    #allocation3 [shape = 'u8[16384]{0}', space=vmem, size = 0x4000, scoped, tag = 'output window, operand 0']
    #allocation4 [shape = 's32[2]{0}', space=sflag, size = 0x8, scoped, tag = 'scoped memory for tpu_custom_call.1']
    %12 = vsyncpa [#allocation4], 0
    %s13 = scalar_lea.sflag [#allocation4], 1
    %14 = vsyncpa %s13, 0
    loop: start=0, step=1, limit=4
    $region2: #{tpu_custom_call.1} parent=1 // loop_pre_header
      _
    $region3: #{tpu_custom_call.1} parent=1 // loop_header
      %s16 = sphi 0, %s20
      %p17 = scmp.ge.s32.totalorder %s16, 4
      %s26 = sphi 0, %s28
      %s29 = sphi 0, %s26
      %s30 = sphi 0, %s29
      %s46 = sphi 0, %s30
      %s50 = sphi 0, %s50
      %s52 = sphi 0, %s50
      %s53 = sphi 0, %s52
      %s67 = sphi 0, %s53
      %s71 = sphi 0, %s71
      %s73 = sphi 0, %s71
      %s74 = sphi 0, %s73
      %s88 = sphi 0, %s74
      %s92 = sphi 0, %s92
      %s94 = sphi 0, %s92
      %s95 = sphi 0, %s94
      %s109 = sphi 0, %s95
      %s113 = sphi 0, %s113
      %s115 = sphi 0, %s113
      %s116 = sphi 0, %s115
      %s130 = sphi 0, %s116
      %s134 = sphi 0, %s134
      %s136 = sphi 0, %s134
      %s137 = sphi 0, %s136
      %s151 = sphi 0, %s137
      %s155 = sphi 0, %s155
      %s157 = sphi 0, %s155
      %s158 = sphi 0, %s157
      %s172 = sphi 0, %s158
      %s178 = sphi 0, %s180
      %s181 = sphi 0, %s178
      %s182 = sphi 0, %s181
      %s198 = sphi 0, %s182
    $region4: #{tpu_custom_call.1} parent=1 // loop_header_branch
      %19 = sbr.rel (%p17) target = $region8
    $region5: #{tpu_custom_call.1} parent=1 // loop_body
      %s21 = ssub.s32 %s16, 1
      %s22 = ssub.s32 %s16, 2
      %s23 = sadd.s32 %s16, 1
      %s24 = ssub.s32 %s16, %s23
      %p25 = scmp.eq.s32.totalorder %s24, 0
      %s27 = sadd.s32 %s26, 1
      %s28 = scalar_select %p25, %s26, %s27
      %p31 = pneg %p25
      %p32 = scmp.eq.s32.totalorder %s16, 1
      %p33 = por %p31, %p32
      %p34 = scmp.ne.s32.totalorder %s26, %s29
      %p35 = scmp.eq.s32.totalorder %s16, 0
      %p36 = por %p34, %p35
      %p37 = scmp.ne.s32.totalorder %s26, %s29
      %p38 = scmp.eq.s32.totalorder %s21, 1
      %p39 = por %p37, %p38
      %p40 = scmp.ne.s32.totalorder %s29, %s30
      %p41 = scmp.eq.s32.totalorder %s21, 0
      %p42 = por %p40, %p41
      %p43 = scmp.ne.s32.totalorder %s29, %s30
      %p44 = scmp.eq.s32.totalorder %s22, 1
      %p45 = por %p43, %p44
      %p47 = scmp.ne.s32.totalorder %s30, %s46
      %p48 = scmp.eq.s32.totalorder %s22, 0
      %p49 = por %p47, %p48
      %s51 = sadd.s32 %s50, 1
      %p54 = scmp.eq.s32.totalorder %s16, 1
      %p55 = scmp.ne.s32.totalorder %s50, %s52
      %p56 = scmp.eq.s32.totalorder %s16, 0
      %p57 = por %p55, %p56
      %p58 = scmp.ne.s32.totalorder %s50, %s52
      %p59 = scmp.eq.s32.totalorder %s21, 1
      %p60 = por %p58, %p59
      %p61 = scmp.ne.s32.totalorder %s52, %s53
      %p62 = scmp.eq.s32.totalorder %s21, 0
      %p63 = por %p61, %p62
      %p64 = scmp.ne.s32.totalorder %s52, %s53
      %p65 = scmp.eq.s32.totalorder %s22, 1
      %p66 = por %p64, %p65
      %p68 = scmp.ne.s32.totalorder %s53, %s67
      %p69 = scmp.eq.s32.totalorder %s22, 0
      %p70 = por %p68, %p69
      %s72 = sadd.s32 %s71, 1
      %p75 = scmp.eq.s32.totalorder %s16, 1
      %p76 = scmp.ne.s32.totalorder %s71, %s73
      %p77 = scmp.eq.s32.totalorder %s16, 0
      %p78 = por %p76, %p77
      %p79 = scmp.ne.s32.totalorder %s71, %s73
      %p80 = scmp.eq.s32.totalorder %s21, 1
      %p81 = por %p79, %p80
      %p82 = scmp.ne.s32.totalorder %s73, %s74
      %p83 = scmp.eq.s32.totalorder %s21, 0
      %p84 = por %p82, %p83
      %p85 = scmp.ne.s32.totalorder %s73, %s74
      %p86 = scmp.eq.s32.totalorder %s22, 1
      %p87 = por %p85, %p86
      %p89 = scmp.ne.s32.totalorder %s74, %s88
      %p90 = scmp.eq.s32.totalorder %s22, 0
      %p91 = por %p89, %p90
      %s93 = sadd.s32 %s92, 1
      %p96 = scmp.eq.s32.totalorder %s16, 1
      %p97 = scmp.ne.s32.totalorder %s92, %s94
      %p98 = scmp.eq.s32.totalorder %s16, 0
      %p99 = por %p97, %p98
      %p100 = scmp.ne.s32.totalorder %s92, %s94
      %p101 = scmp.eq.s32.totalorder %s21, 1
      %p102 = por %p100, %p101
      %p103 = scmp.ne.s32.totalorder %s94, %s95
      %p104 = scmp.eq.s32.totalorder %s21, 0
      %p105 = por %p103, %p104
      %p106 = scmp.ne.s32.totalorder %s94, %s95
      %p107 = scmp.eq.s32.totalorder %s22, 1
      %p108 = por %p106, %p107
      %p110 = scmp.ne.s32.totalorder %s95, %s109
      %p111 = scmp.eq.s32.totalorder %s22, 0
      %p112 = por %p110, %p111
      %s114 = sadd.s32 %s113, 1
      %p117 = scmp.eq.s32.totalorder %s16, 1
      %p118 = scmp.ne.s32.totalorder %s113, %s115
      %p119 = scmp.eq.s32.totalorder %s16, 0
      %p120 = por %p118, %p119
      %p121 = scmp.ne.s32.totalorder %s113, %s115
      %p122 = scmp.eq.s32.totalorder %s21, 1
      %p123 = por %p121, %p122
      %p124 = scmp.ne.s32.totalorder %s115, %s116
      %p125 = scmp.eq.s32.totalorder %s21, 0
      %p126 = por %p124, %p125
      %p127 = scmp.ne.s32.totalorder %s115, %s116
      %p128 = scmp.eq.s32.totalorder %s22, 1
      %p129 = por %p127, %p128
      %p131 = scmp.ne.s32.totalorder %s116, %s130
      %p132 = scmp.eq.s32.totalorder %s22, 0
      %p133 = por %p131, %p132
      %s135 = sadd.s32 %s134, 1
      %p138 = scmp.eq.s32.totalorder %s16, 1
      %p139 = scmp.ne.s32.totalorder %s134, %s136
      %p140 = scmp.eq.s32.totalorder %s16, 0
      %p141 = por %p139, %p140
      %p142 = scmp.ne.s32.totalorder %s134, %s136
      %p143 = scmp.eq.s32.totalorder %s21, 1
      %p144 = por %p142, %p143
      %p145 = scmp.ne.s32.totalorder %s136, %s137
      %p146 = scmp.eq.s32.totalorder %s21, 0
      %p147 = por %p145, %p146
      %p148 = scmp.ne.s32.totalorder %s136, %s137
      %p149 = scmp.eq.s32.totalorder %s22, 1
      %p150 = por %p148, %p149
      %p152 = scmp.ne.s32.totalorder %s137, %s151
      %p153 = scmp.eq.s32.totalorder %s22, 0
      %p154 = por %p152, %p153
      %s156 = sadd.s32 %s155, 1
      %p159 = scmp.eq.s32.totalorder %s16, 1
      %p160 = scmp.ne.s32.totalorder %s155, %s157
      %p161 = scmp.eq.s32.totalorder %s16, 0
      %p162 = por %p160, %p161
      %p163 = scmp.ne.s32.totalorder %s155, %s157
      %p164 = scmp.eq.s32.totalorder %s21, 1
      %p165 = por %p163, %p164
      %p166 = scmp.ne.s32.totalorder %s157, %s158
      %p167 = scmp.eq.s32.totalorder %s21, 0
      %p168 = por %p166, %p167
      %p169 = scmp.ne.s32.totalorder %s157, %s158
      %p170 = scmp.eq.s32.totalorder %s22, 1
      %p171 = por %p169, %p170
      %p173 = scmp.ne.s32.totalorder %s158, %s172
      %p174 = scmp.eq.s32.totalorder %s22, 0
      %p175 = por %p173, %p174
      %s176 = ssub.s32 %s16, %s23
      %p177 = scmp.eq.s32.totalorder %s176, 0
      %s179 = sadd.s32 %s178, 1
      %s180 = scalar_select %p177, %s178, %s179
      %p183 = pneg %p177
      %p184 = scmp.eq.s32.totalorder %s16, 1
      %p185 = por %p183, %p184
      %p186 = scmp.ne.s32.totalorder %s178, %s181
      %p187 = scmp.eq.s32.totalorder %s16, 0
      %p188 = por %p186, %p187
      %p189 = scmp.ne.s32.totalorder %s178, %s181
      %p190 = scmp.eq.s32.totalorder %s21, 1
      %p191 = por %p189, %p190
      %p192 = scmp.ne.s32.totalorder %s181, %s182
      %p193 = scmp.eq.s32.totalorder %s21, 0
      %p194 = por %p192, %p193
      %p195 = scmp.ne.s32.totalorder %s181, %s182
      %p196 = scmp.eq.s32.totalorder %s22, 1
      %p197 = por %p195, %p196
      %p199 = scmp.ne.s32.totalorder %s182, %s198
      %p200 = scmp.eq.s32.totalorder %s22, 0
      %p201 = por %p199, %p200
      %p202 = scmp.le.s32.totalorder 1, %s16
      %p203 = scmp.lt.s32.totalorder %s16, 3
      %p204 = pnand %p202, %p203
      %p205 = pneg %p204
      // Predicated region
      $region9: #{tpu_custom_call.1} parent=5 // pred_check
        _
      $region10: #{tpu_custom_call.1} parent=5 // pred_check_branch
        %207 = sbr.rel (%p204) target = $region12
      $region11: #{tpu_custom_call.1} parent=5 // pred_region
        %s208 = ssub.s32 %s16, 1
        // Predicated region
        $region13: #{tpu_custom_call.1} parent=11 // pred_check
          %p209 = pneg %p63
        $region14: #{tpu_custom_call.1} parent=11 // pred_check_branch
          %211 = sbr.rel (%p209) target = $region16
        $region15: #{tpu_custom_call.1} parent=11 // pred_region
          _
        $region16: #{tpu_custom_call.1} parent=11 // pred_fallthru
          _
        // Predicated region
        $region17: #{tpu_custom_call.1} parent=11 // pred_check
          %p212 = pneg %p84
        $region18: #{tpu_custom_call.1} parent=11 // pred_check_branch
          %214 = sbr.rel (%p212) target = $region20
        $region19: #{tpu_custom_call.1} parent=11 // pred_region
          _
        $region20: #{tpu_custom_call.1} parent=11 // pred_fallthru
          _
        // Predicated region
        $region21: #{tpu_custom_call.1} parent=11 // pred_check
          %p215 = pneg %p105
        $region22: #{tpu_custom_call.1} parent=11 // pred_check_branch
          %217 = sbr.rel (%p215) target = $region24
        $region23: #{tpu_custom_call.1} parent=11 // pred_region
          _
        $region24: #{tpu_custom_call.1} parent=11 // pred_fallthru
          _
        // Predicated region
        $region25: #{tpu_custom_call.1} parent=11 // pred_check
          %p218 = pneg %p126
        $region26: #{tpu_custom_call.1} parent=11 // pred_check_branch
          %220 = sbr.rel (%p218) target = $region28
        $region27: #{tpu_custom_call.1} parent=11 // pred_region
          _
        $region28: #{tpu_custom_call.1} parent=11 // pred_fallthru
          _
        // Predicated region
        $region29: #{tpu_custom_call.1} parent=11 // pred_check
          %p221 = pneg %p147
        $region30: #{tpu_custom_call.1} parent=11 // pred_check_branch
          %223 = sbr.rel (%p221) target = $region32
        $region31: #{tpu_custom_call.1} parent=11 // pred_region
          _
        $region32: #{tpu_custom_call.1} parent=11 // pred_fallthru
          _
        // Predicated region
        $region33: #{tpu_custom_call.1} parent=11 // pred_check
          %p224 = pneg %p168
        $region34: #{tpu_custom_call.1} parent=11 // pred_check_branch
          %226 = sbr.rel (%p224) target = $region36
        $region35: #{tpu_custom_call.1} parent=11 // pred_region
          _
        $region36: #{tpu_custom_call.1} parent=11 // pred_fallthru
          _
      $region12: #{tpu_custom_call.1} parent=5 // pred_fallthru
        _
      %p227 = scmp.lt.s32.totalorder %s16, 2
      // Predicated region
      $region37: #{tpu_custom_call.1} parent=5 // pred_check
        %p228 = pneg %p227
      $region38: #{tpu_custom_call.1} parent=5 // pred_check_branch
        %230 = sbr.rel (%p228) target = $region40
      $region39: #{tpu_custom_call.1} parent=5 // pred_region
        // Predicated region
        $region41: #{tpu_custom_call.1} parent=39 // pred_check
          %p231 = pneg %p36
        $region42: #{tpu_custom_call.1} parent=39 // pred_check_branch
          %233 = sbr.rel (%p231) target = $region44
        $region43: #{tpu_custom_call.1} parent=39 // pred_region
          %p234 = scmp.lt.s32.totalorder %s16, 1
          %s235 = scalar_select %p234, %s16, 1
          %s236 = smul.addr %s235, 32
          %s237 = smul.addr %s236, 8
          %s238 = scalar_lea.vmem %s0, %s237
        $region44: #{tpu_custom_call.1} parent=39 // pred_fallthru
          _
      $region40: #{tpu_custom_call.1} parent=5 // pred_fallthru
        _
      %p239 = scmp.le.s32.totalorder 1, %s16
      %p240 = scmp.lt.s32.totalorder %s16, 3
      %p241 = pnand %p239, %p240
      %p242 = pneg %p241
      // Predicated region
      $region45: #{tpu_custom_call.1} parent=5 // pred_check
        _
      $region46: #{tpu_custom_call.1} parent=5 // pred_check_branch
        %244 = sbr.rel (%p241) target = $region48
      $region47: #{tpu_custom_call.1} parent=5 // pred_region
        %s245 = ssub.s32 %s16, 1
        %p246 = scmp.lt.s32.totalorder %s21, 1
        %s247 = scalar_select %p246, %s21, 1
        %s248 = smul.addr %s247, 32
        %s249 = smul.addr %s248, 8
        %s250 = scalar_lea.vmem %s0, %s249
        %p251 = pneg %p42
        %p252 = pneg %p39
        %p253 = pneg %p63
        %p254 = pneg %p60
        %p255 = pneg %p84
        %p256 = pneg %p81
        %p257 = pneg %p105
        %p258 = pneg %p102
        %p259 = pneg %p126
        %p260 = pneg %p123
        %p261 = pneg %p147
        %p262 = pneg %p144
        %p263 = pneg %p168
        %p264 = pneg %p165
        %p265 = pneg %p194
        %p266 = pneg %p191
        %s267 = sand.u32 %s181, 1
        %s268 = scalar_lea.sflag [#allocation4], %s267
        %s269 = sand.u32 %s181, 1
        %s270 = smul.addr %s269, 16
        %s271 = scalar_lea.vmem [#allocation3], %s270
        %p272 = scmp.lt.s32.totalorder %s21, 1
        %s273 = scalar_select %p272, %s21, 1
        %s274 = smul.addr %s273, 32
        %s275 = smul.addr %s274, 8
        %s276 = scalar_lea.vmem %s0, %s275
        %v278 = vld [vmem:[%s276] sm:$0xff]
        %v279 = vld [vmem:[%s276 + $0x8] sm:$0xff]
        %v280 = vld [vmem:[%s276 + $0x10] sm:$0xff]
        %v281 = vld [vmem:[%s276 + $0x18] sm:$0xff]
        %v282 = vld [vmem:[%s276 + $0x20] sm:$0xff]
        %v283 = vld [vmem:[%s276 + $0x28] sm:$0xff]
        %v284 = vld [vmem:[%s276 + $0x30] sm:$0xff]
        %v285 = vld [vmem:[%s276 + $0x38] sm:$0xff]
        %v286 = vld [vmem:[%s276 + $0x40] sm:$0xff]
        %v287 = vld [vmem:[%s276 + $0x48] sm:$0xff]
        %v288 = vld [vmem:[%s276 + $0x50] sm:$0xff]
        %v289 = vld [vmem:[%s276 + $0x58] sm:$0xff]
        %v290 = vld [vmem:[%s276 + $0x60] sm:$0xff]
        %v291 = vld [vmem:[%s276 + $0x68] sm:$0xff]
        %v292 = vld [vmem:[%s276 + $0x70] sm:$0xff]
        %v293 = vld [vmem:[%s276 + $0x78] sm:$0xff]
        %v294 = vld [vmem:[%s276 + $0x80] sm:$0xff]
        %v295 = vld [vmem:[%s276 + $0x88] sm:$0xff]
        %v296 = vld [vmem:[%s276 + $0x90] sm:$0xff]
        %v297 = vld [vmem:[%s276 + $0x98] sm:$0xff]
        %v298 = vld [vmem:[%s276 + $0xa0] sm:$0xff]
        %v299 = vld [vmem:[%s276 + $0xa8] sm:$0xff]
        %v300 = vld [vmem:[%s276 + $0xb0] sm:$0xff]
        %v301 = vld [vmem:[%s276 + $0xb8] sm:$0xff]
        %v302 = vld [vmem:[%s276 + $0xc0] sm:$0xff]
        %v303 = vld [vmem:[%s276 + $0xc8] sm:$0xff]
        %v304 = vld [vmem:[%s276 + $0xd0] sm:$0xff]
        %v305 = vld [vmem:[%s276 + $0xd8] sm:$0xff]
        %v306 = vld [vmem:[%s276 + $0xe0] sm:$0xff]
        %v307 = vld [vmem:[%s276 + $0xe8] sm:$0xff]
        %v308 = vld [vmem:[%s276 + $0xf0] sm:$0xff]
        %v309 = vld [vmem:[%s276 + $0xf8] sm:$0xff]
        %v310 = vpack.c.bf16 %v279, %v278
        %v311 = vpack.c.bf16 %v281, %v280
        %v312 = vpack.c.bf16 %v283, %v282
        %v313 = vpack.c.bf16 %v285, %v284
        %v314 = vpack.c.bf16 %v287, %v286
        %v315 = vpack.c.bf16 %v289, %v288
        %v316 = vpack.c.bf16 %v291, %v290
        %v317 = vpack.c.bf16 %v293, %v292
        %v318 = vpack.c.bf16 %v295, %v294
        %v319 = vpack.c.bf16 %v297, %v296
        %v320 = vpack.c.bf16 %v299, %v298
        %v321 = vpack.c.bf16 %v301, %v300
        %v322 = vpack.c.bf16 %v303, %v302
        %v323 = vpack.c.bf16 %v305, %v304
        %v324 = vpack.c.bf16 %v307, %v306
        %v325 = vpack.c.bf16 %v309, %v308
        %v326 = vld [vmem:[%s1] sm:$0xf]
        %v327 = vld [vmem:[%s2] sm:$0x1]
        %v329 = vperm.slane %v327, 0
        %vm331 = vcmask 64512
        %v333 = vsel %vm331, %v310, 0
        %v336 = vsel %vm331, %v311, 0
        %v339 = vsel %vm331, %v312, 0
        %v342 = vsel %vm331, %v313, 0
        %v345 = vsel %vm331, %v314, 0
        %v348 = vsel %vm331, %v315, 0
        %v351 = vsel %vm331, %v316, 0
        %v354 = vsel %vm331, %v317, 0
        %v357 = vsel %vm331, %v318, 0
        %v360 = vsel %vm331, %v319, 0
        %v363 = vsel %vm331, %v320, 0
        %v366 = vsel %vm331, %v321, 0
        %v369 = vsel %vm331, %v322, 0
        %v372 = vsel %vm331, %v323, 0
        %v375 = vsel %vm331, %v324, 0
        %v378 = vsel %vm331, %v325, 0
        %vm380 = vcmask 1043456
        %v382 = vsel %vm380, %v326, 0
        %384 = vmatpush.bf16.msra.mxu0 0
        %385 = vmatpush.bf16.msra.mxu0 0
        %386 = vmatpush.bf16.msra.mxu0 0
        %387 = vmatpush.bf16.msra.mxu0 0
        %388 = vmatpush.bf16.msra.mxu0 0
        %389 = vmatpush.bf16.msra.mxu0 0
        %390 = vmatpush.bf16.msra.mxu0 0
        %391 = vmatpush.bf16.msra.mxu0 %v382
        %392 = vmatmul.bf16.gmra.mxu0 %v333
        %v393 = vpop.f32.mrf.mxu0
        %v394 = vadd.f32 %v329, %v393
        %v395 = vpop.f32.mrf.mxu0
        %v396 = vadd.f32 %v329, %v395
        %397 = vmatmul.bf16.gmra.mxu0 %v336
        %v398 = vpop.f32.mrf.mxu0
        %v399 = vadd.f32 %v329, %v398
        %v400 = vpop.f32.mrf.mxu0
        %v401 = vadd.f32 %v329, %v400
        %402 = vmatmul.bf16.gmra.mxu0 %v339
        %v403 = vpop.f32.mrf.mxu0
        %v404 = vadd.f32 %v329, %v403
        %v405 = vpop.f32.mrf.mxu0
        %v406 = vadd.f32 %v329, %v405
        %407 = vmatmul.bf16.gmra.mxu0 %v342
        %v408 = vpop.f32.mrf.mxu0
        %v409 = vadd.f32 %v329, %v408
        %v410 = vpop.f32.mrf.mxu0
        %v411 = vadd.f32 %v329, %v410
        %412 = vmatmul.bf16.gmra.mxu0 %v345
        %v413 = vpop.f32.mrf.mxu0
        %v414 = vadd.f32 %v329, %v413
        %v415 = vpop.f32.mrf.mxu0
        %v416 = vadd.f32 %v329, %v415
        %417 = vmatmul.bf16.gmra.mxu0 %v348
        %v418 = vpop.f32.mrf.mxu0
        %v419 = vadd.f32 %v329, %v418
        %v420 = vpop.f32.mrf.mxu0
        %v421 = vadd.f32 %v329, %v420
        %422 = vmatmul.bf16.gmra.mxu0 %v351
        %v423 = vpop.f32.mrf.mxu0
        %v424 = vadd.f32 %v329, %v423
        %v425 = vpop.f32.mrf.mxu0
        %v426 = vadd.f32 %v329, %v425
        %427 = vmatmul.bf16.gmra.mxu0 %v354
        %v428 = vpop.f32.mrf.mxu0
        %v429 = vadd.f32 %v329, %v428
        %v430 = vpop.f32.mrf.mxu0
        %v431 = vadd.f32 %v329, %v430
        %432 = vmatmul.bf16.gmra.mxu0 %v357
        %v433 = vpop.f32.mrf.mxu0
        %v434 = vadd.f32 %v329, %v433
        %v435 = vpop.f32.mrf.mxu0
        %v436 = vadd.f32 %v329, %v435
        %437 = vmatmul.bf16.gmra.mxu0 %v360
        %v438 = vpop.f32.mrf.mxu0
        %v439 = vadd.f32 %v329, %v438
        %v440 = vpop.f32.mrf.mxu0
        %v441 = vadd.f32 %v329, %v440
        %442 = vmatmul.bf16.gmra.mxu0 %v363
        %v443 = vpop.f32.mrf.mxu0
        %v444 = vadd.f32 %v329, %v443
        %v445 = vpop.f32.mrf.mxu0
        %v446 = vadd.f32 %v329, %v445
        %447 = vmatmul.bf16.gmra.mxu0 %v366
        %v448 = vpop.f32.mrf.mxu0
        %v449 = vadd.f32 %v329, %v448
        %v450 = vpop.f32.mrf.mxu0
        %v451 = vadd.f32 %v329, %v450
        %452 = vmatmul.bf16.gmra.mxu0 %v369
        %v453 = vpop.f32.mrf.mxu0
        %v454 = vadd.f32 %v329, %v453
        %v455 = vpop.f32.mrf.mxu0
        %v456 = vadd.f32 %v329, %v455
        %457 = vmatmul.bf16.gmra.mxu0 %v372
        %v458 = vpop.f32.mrf.mxu0
        %v459 = vadd.f32 %v329, %v458
        %v460 = vpop.f32.mrf.mxu0
        %v461 = vadd.f32 %v329, %v460
        %462 = vmatmul.bf16.gmra.mxu0 %v375
        %v463 = vpop.f32.mrf.mxu0
        %v464 = vadd.f32 %v329, %v463
        %v465 = vpop.f32.mrf.mxu0
        %v466 = vadd.f32 %v329, %v465
        %467 = vmatmul.bf16.gmra.mxu0 %v378
        %v468 = vpop.f32.mrf.mxu0
        %v469 = vadd.f32 %v329, %v468
        %v470 = vpop.f32.mrf.mxu0
        %v471 = vadd.f32 %v329, %v470
        %472 = vdwg.mxu0
        %v473 = vmax.f32 %v394, 0.0
        %v474 = vmax.f32 %v396, 0.0
        %v475 = vmax.f32 %v399, 0.0
        %v476 = vmax.f32 %v401, 0.0
        %v477 = vmax.f32 %v404, 0.0
        %v478 = vmax.f32 %v406, 0.0
        %v479 = vmax.f32 %v409, 0.0
        %v480 = vmax.f32 %v411, 0.0
        %v481 = vmax.f32 %v414, 0.0
        %v482 = vmax.f32 %v416, 0.0
        %v483 = vmax.f32 %v419, 0.0
        %v484 = vmax.f32 %v421, 0.0
        %v485 = vmax.f32 %v424, 0.0
        %v486 = vmax.f32 %v426, 0.0
        %v487 = vmax.f32 %v429, 0.0
        %v488 = vmax.f32 %v431, 0.0
        %v489 = vmax.f32 %v434, 0.0
        %v490 = vmax.f32 %v436, 0.0
        %v491 = vmax.f32 %v439, 0.0
        %v492 = vmax.f32 %v441, 0.0
        %v493 = vmax.f32 %v444, 0.0
        %v494 = vmax.f32 %v446, 0.0
        %v495 = vmax.f32 %v449, 0.0
        %v496 = vmax.f32 %v451, 0.0
        %v497 = vmax.f32 %v454, 0.0
        %v498 = vmax.f32 %v456, 0.0
        %v499 = vmax.f32 %v459, 0.0
        %v500 = vmax.f32 %v461, 0.0
        %v501 = vmax.f32 %v464, 0.0
        %v502 = vmax.f32 %v466, 0.0
        %v503 = vmax.f32 %v469, 0.0
        %v504 = vmax.f32 %v471, 0.0
        %v505 = vld [vmem:[%s3] sm:$0x7]
        %v506 = vld [vmem:[%s3 + $0x4] sm:$0x7]
        %v507 = vld [vmem:[%s3 + $0x8] sm:$0x7]
        %vm508 = vcmask 31744
        %509 = vst.msk [vmem:[#allocation2] sm:$0xff] %vm508, 0.0
        %510 = vst.msk [vmem:[#allocation2 + $0x8] sm:$0xff] %vm508, 0.0
        %vm511 = vcmask 25600
        %512 = vst.msk [vmem:[#allocation2 + $0x10] sm:$0x3] %vm511, 0.0
        %s513 = scalar_lea.vmem [#allocation2], 408
        %514 = vst.msk [vmem:[%s513] sm:$0xff] %vm508, 0.0
        %515 = vst.msk [vmem:[%s513 + $0x8] sm:$0xff] %vm508, 0.0
        %516 = vst.msk [vmem:[%s513 + $0x10] sm:$0x3] %vm511, 0.0
        %vm517 = vcmask 24576
        %518 = vst.msk [vmem:[#allocation2] sm:$0x1] %vm517, 0.0
        %519 = vst.msk [vmem:[#allocation2 + $0x18] sm:$0x1] %vm517, 0.0
        %520 = vst.msk [vmem:[#allocation2 + $0x30] sm:$0x1] %vm517, 0.0
        %521 = vst.msk [vmem:[#allocation2 + $0x48] sm:$0x1] %vm517, 0.0
        %522 = vst.msk [vmem:[#allocation2 + $0x60] sm:$0x1] %vm517, 0.0
        %523 = vst.msk [vmem:[#allocation2 + $0x78] sm:$0x1] %vm517, 0.0
        %524 = vst.msk [vmem:[#allocation2 + $0x90] sm:$0x1] %vm517, 0.0
        %525 = vst.msk [vmem:[#allocation2 + $0xa8] sm:$0x1] %vm517, 0.0
        %526 = vst.msk [vmem:[#allocation2 + $0xc0] sm:$0x1] %vm517, 0.0
        %527 = vst.msk [vmem:[#allocation2 + $0xd8] sm:$0x1] %vm517, 0.0
        %528 = vst.msk [vmem:[#allocation2 + $0xf0] sm:$0x1] %vm517, 0.0
        %529 = vst.msk [vmem:[#allocation2 + $0x108] sm:$0x1] %vm517, 0.0
        %530 = vst.msk [vmem:[#allocation2 + $0x120] sm:$0x1] %vm517, 0.0
        %531 = vst.msk [vmem:[#allocation2 + $0x138] sm:$0x1] %vm517, 0.0
        %532 = vst.msk [vmem:[#allocation2 + $0x150] sm:$0x1] %vm517, 0.0
        %533 = vst.msk [vmem:[#allocation2 + $0x168] sm:$0x1] %vm517, 0.0
        %534 = vst.msk [vmem:[#allocation2 + $0x180] sm:$0x1] %vm517, 0.0
        %535 = vst.msk [vmem:[#allocation2 + $0x198] sm:$0x1] %vm517, 0.0
        %536 = vst.msk [vmem:[#allocation2 + $0x11] sm:$0x1] %vm517, 0.0
        %537 = vst.msk [vmem:[#allocation2 + $0x29] sm:$0x1] %vm517, 0.0
        %538 = vst.msk [vmem:[#allocation2 + $0x41] sm:$0x1] %vm517, 0.0
        %539 = vst.msk [vmem:[#allocation2 + $0x59] sm:$0x1] %vm517, 0.0
        %540 = vst.msk [vmem:[#allocation2 + $0x71] sm:$0x1] %vm517, 0.0
        %541 = vst.msk [vmem:[#allocation2 + $0x89] sm:$0x1] %vm517, 0.0
        %542 = vst.msk [vmem:[#allocation2 + $0xa1] sm:$0x1] %vm517, 0.0
        %543 = vst.msk [vmem:[#allocation2 + $0xb9] sm:$0x1] %vm517, 0.0
        %544 = vst.msk [vmem:[#allocation2 + $0xd1] sm:$0x1] %vm517, 0.0
        %545 = vst.msk [vmem:[#allocation2 + $0xe9] sm:$0x1] %vm517, 0.0
        %546 = vst.msk [vmem:[#allocation2 + $0x101] sm:$0x1] %vm517, 0.0
        %547 = vst.msk [vmem:[#allocation2 + $0x119] sm:$0x1] %vm517, 0.0
        %548 = vst.msk [vmem:[#allocation2 + $0x131] sm:$0x1] %vm517, 0.0
        %549 = vst.msk [vmem:[#allocation2 + $0x149] sm:$0x1] %vm517, 0.0
        %550 = vst.msk [vmem:[#allocation2 + $0x161] sm:$0x1] %vm517, 0.0
        %551 = vst.msk [vmem:[#allocation2 + $0x179] sm:$0x1] %vm517, 0.0
        %552 = vst.msk [vmem:[#allocation2 + $0x191] sm:$0x1] %vm517, 0.0
        %553 = vst.msk [vmem:[#allocation2 + $0x1a9] sm:$0x1] %vm517, 0.0
        %s554 = scalar_lea.vmem [#allocation2], 24
        %555 = vst.msk [vmem:[%s554 + $0x1] sm:$0xff] %vm508, %v473
        %556 = vst.msk [vmem:[%s554 + $0x9] sm:$0xff] %vm508, %v474
        %557 = vst.msk [vmem:[%s554 + $0x19] sm:$0xff] %vm508, %v475
        %558 = vst.msk [vmem:[%s554 + $0x21] sm:$0xff] %vm508, %v476
        %559 = vst.msk [vmem:[%s554 + $0x31] sm:$0xff] %vm508, %v477
        %560 = vst.msk [vmem:[%s554 + $0x39] sm:$0xff] %vm508, %v478
        %561 = vst.msk [vmem:[%s554 + $0x49] sm:$0xff] %vm508, %v479
        %562 = vst.msk [vmem:[%s554 + $0x51] sm:$0xff] %vm508, %v480
        %563 = vst.msk [vmem:[%s554 + $0x61] sm:$0xff] %vm508, %v481
        %564 = vst.msk [vmem:[%s554 + $0x69] sm:$0xff] %vm508, %v482
        %565 = vst.msk [vmem:[%s554 + $0x79] sm:$0xff] %vm508, %v483
        %566 = vst.msk [vmem:[%s554 + $0x81] sm:$0xff] %vm508, %v484
        %567 = vst.msk [vmem:[%s554 + $0x91] sm:$0xff] %vm508, %v485
        %568 = vst.msk [vmem:[%s554 + $0x99] sm:$0xff] %vm508, %v486
        %569 = vst.msk [vmem:[%s554 + $0xa9] sm:$0xff] %vm508, %v487
        %570 = vst.msk [vmem:[%s554 + $0xb1] sm:$0xff] %vm508, %v488
        %571 = vst.msk [vmem:[%s554 + $0xc1] sm:$0xff] %vm508, %v489
        %572 = vst.msk [vmem:[%s554 + $0xc9] sm:$0xff] %vm508, %v490
        %573 = vst.msk [vmem:[%s554 + $0xd9] sm:$0xff] %vm508, %v491
        %574 = vst.msk [vmem:[%s554 + $0xe1] sm:$0xff] %vm508, %v492
        %575 = vst.msk [vmem:[%s554 + $0xf1] sm:$0xff] %vm508, %v493
        %576 = vst.msk [vmem:[%s554 + $0xf9] sm:$0xff] %vm508, %v494
        %577 = vst.msk [vmem:[%s554 + $0x109] sm:$0xff] %vm508, %v495
        %578 = vst.msk [vmem:[%s554 + $0x111] sm:$0xff] %vm508, %v496
        %579 = vst.msk [vmem:[%s554 + $0x121] sm:$0xff] %vm508, %v497
        %580 = vst.msk [vmem:[%s554 + $0x129] sm:$0xff] %vm508, %v498
        %581 = vst.msk [vmem:[%s554 + $0x139] sm:$0xff] %vm508, %v499
        %582 = vst.msk [vmem:[%s554 + $0x141] sm:$0xff] %vm508, %v500
        %583 = vst.msk [vmem:[%s554 + $0x151] sm:$0xff] %vm508, %v501
        %584 = vst.msk [vmem:[%s554 + $0x159] sm:$0xff] %vm508, %v502
        %585 = vst.msk [vmem:[%s554 + $0x169] sm:$0xff] %vm508, %v503
        %586 = vst.msk [vmem:[%s554 + $0x171] sm:$0xff] %vm508, %v504
        %v587 = vld [vmem:[#allocation2] sm:$0xff]
        %v588 = vld [vmem:[#allocation2 + $0x8] sm:$0xff]
        %v589 = vld [vmem:[#allocation2 + $0x18] sm:$0xff]
        %v590 = vld [vmem:[#allocation2 + $0x20] sm:$0xff]
        %v591 = vld [vmem:[#allocation2 + $0x30] sm:$0xff]
        %v592 = vld [vmem:[#allocation2 + $0x38] sm:$0xff]
        %v593 = vld [vmem:[#allocation2 + $0x48] sm:$0xff]
        %v594 = vld [vmem:[#allocation2 + $0x50] sm:$0xff]
        %v595 = vld [vmem:[#allocation2 + $0x60] sm:$0xff]
        %v596 = vld [vmem:[#allocation2 + $0x68] sm:$0xff]
        %v597 = vld [vmem:[#allocation2 + $0x78] sm:$0xff]
        %v598 = vld [vmem:[#allocation2 + $0x80] sm:$0xff]
        %v599 = vld [vmem:[#allocation2 + $0x90] sm:$0xff]
        %v600 = vld [vmem:[#allocation2 + $0x98] sm:$0xff]
        %v601 = vld [vmem:[#allocation2 + $0xa8] sm:$0xff]
        %v602 = vld [vmem:[#allocation2 + $0xb0] sm:$0xff]
        %v603 = vld [vmem:[#allocation2 + $0xc0] sm:$0xff]
        %v604 = vld [vmem:[#allocation2 + $0xc8] sm:$0xff]
        %v605 = vld [vmem:[#allocation2 + $0xd8] sm:$0xff]
        %v606 = vld [vmem:[#allocation2 + $0xe0] sm:$0xff]
        %v607 = vld [vmem:[#allocation2 + $0xf0] sm:$0xff]
        %v608 = vld [vmem:[#allocation2 + $0xf8] sm:$0xff]
        %v609 = vld [vmem:[#allocation2 + $0x108] sm:$0xff]
        %v610 = vld [vmem:[#allocation2 + $0x110] sm:$0xff]
        %v611 = vld [vmem:[#allocation2 + $0x120] sm:$0xff]
        %v612 = vld [vmem:[#allocation2 + $0x128] sm:$0xff]
        %v613 = vld [vmem:[#allocation2 + $0x138] sm:$0xff]
        %v614 = vld [vmem:[#allocation2 + $0x140] sm:$0xff]
        %v615 = vld [vmem:[#allocation2 + $0x150] sm:$0xff]
        %v616 = vld [vmem:[#allocation2 + $0x158] sm:$0xff]
        %v617 = vld [vmem:[#allocation2 + $0x168] sm:$0xff]
        %v618 = vld [vmem:[#allocation2 + $0x170] sm:$0xff]
        %v619 = vperm.slane %v505, 0
        %v620 = vmul.f32 %v587, %v619
        %v621 = vmul.f32 %v588, %v619
        %v622 = vmul.f32 %v589, %v619
        %v623 = vmul.f32 %v590, %v619
        %v624 = vmul.f32 %v591, %v619
        %v625 = vmul.f32 %v592, %v619
        %v626 = vmul.f32 %v593, %v619
        %v627 = vmul.f32 %v594, %v619
        %v628 = vmul.f32 %v595, %v619
        %v629 = vmul.f32 %v596, %v619
        %v630 = vmul.f32 %v597, %v619
        %v631 = vmul.f32 %v598, %v619
        %v632 = vmul.f32 %v599, %v619
        %v633 = vmul.f32 %v600, %v619
        %v634 = vmul.f32 %v601, %v619
        %v635 = vmul.f32 %v602, %v619
        %v636 = vmul.f32 %v603, %v619
        %v637 = vmul.f32 %v604, %v619
        %v638 = vmul.f32 %v605, %v619
        %v639 = vmul.f32 %v606, %v619
        %v640 = vmul.f32 %v607, %v619
        %v641 = vmul.f32 %v608, %v619
        %v642 = vmul.f32 %v609, %v619
        %v643 = vmul.f32 %v610, %v619
        %v644 = vmul.f32 %v611, %v619
        %v645 = vmul.f32 %v612, %v619
        %v646 = vmul.f32 %v613, %v619
        %v647 = vmul.f32 %v614, %v619
        %v648 = vmul.f32 %v615, %v619
        %v649 = vmul.f32 %v616, %v619
        %v650 = vmul.f32 %v617, %v619
        %v651 = vmul.f32 %v618, %v619
        %v652 = vadd.f32 %v620, 0.0
        %v653 = vadd.f32 %v621, 0.0
        %v654 = vadd.f32 %v622, 0.0
        %v655 = vadd.f32 %v623, 0.0
        %v656 = vadd.f32 %v624, 0.0
        %v657 = vadd.f32 %v625, 0.0
        %v658 = vadd.f32 %v626, 0.0
        %v659 = vadd.f32 %v627, 0.0
        %v660 = vadd.f32 %v628, 0.0
        %v661 = vadd.f32 %v629, 0.0
        %v662 = vadd.f32 %v630, 0.0
        %v663 = vadd.f32 %v631, 0.0
        %v664 = vadd.f32 %v632, 0.0
        %v665 = vadd.f32 %v633, 0.0
        %v666 = vadd.f32 %v634, 0.0
        %v667 = vadd.f32 %v635, 0.0
        %v668 = vadd.f32 %v636, 0.0
        %v669 = vadd.f32 %v637, 0.0
        %v670 = vadd.f32 %v638, 0.0
        %v671 = vadd.f32 %v639, 0.0
        %v672 = vadd.f32 %v640, 0.0
        %v673 = vadd.f32 %v641, 0.0
        %v674 = vadd.f32 %v642, 0.0
        %v675 = vadd.f32 %v643, 0.0
        %v676 = vadd.f32 %v644, 0.0
        %v677 = vadd.f32 %v645, 0.0
        %v678 = vadd.f32 %v646, 0.0
        %v679 = vadd.f32 %v647, 0.0
        %v680 = vadd.f32 %v648, 0.0
        %v681 = vadd.f32 %v649, 0.0
        %v682 = vadd.f32 %v650, 0.0
        %v683 = vadd.f32 %v651, 0.0
        %v684 = vld [vmem:[#allocation2 + $0x1] sm:$0xff]
        %v685 = vld [vmem:[#allocation2 + $0x9] sm:$0xff]
        %v686 = vld [vmem:[#allocation2 + $0x19] sm:$0xff]
        %v687 = vld [vmem:[#allocation2 + $0x21] sm:$0xff]
        %v688 = vld [vmem:[#allocation2 + $0x31] sm:$0xff]
        %v689 = vld [vmem:[#allocation2 + $0x39] sm:$0xff]
        %v690 = vld [vmem:[#allocation2 + $0x49] sm:$0xff]
        %v691 = vld [vmem:[#allocation2 + $0x51] sm:$0xff]
        %v692 = vld [vmem:[#allocation2 + $0x61] sm:$0xff]
        %v693 = vld [vmem:[#allocation2 + $0x69] sm:$0xff]
        %v694 = vld [vmem:[#allocation2 + $0x79] sm:$0xff]
        %v695 = vld [vmem:[#allocation2 + $0x81] sm:$0xff]
        %v696 = vld [vmem:[#allocation2 + $0x91] sm:$0xff]
        %v697 = vld [vmem:[#allocation2 + $0x99] sm:$0xff]
        %v698 = vld [vmem:[#allocation2 + $0xa9] sm:$0xff]
        %v699 = vld [vmem:[#allocation2 + $0xb1] sm:$0xff]
        %v700 = vld [vmem:[#allocation2 + $0xc1] sm:$0xff]
        %v701 = vld [vmem:[#allocation2 + $0xc9] sm:$0xff]
        %v702 = vld [vmem:[#allocation2 + $0xd9] sm:$0xff]
        %v703 = vld [vmem:[#allocation2 + $0xe1] sm:$0xff]
        %v704 = vld [vmem:[#allocation2 + $0xf1] sm:$0xff]
        %v705 = vld [vmem:[#allocation2 + $0xf9] sm:$0xff]
        %v706 = vld [vmem:[#allocation2 + $0x109] sm:$0xff]
        %v707 = vld [vmem:[#allocation2 + $0x111] sm:$0xff]
        %v708 = vld [vmem:[#allocation2 + $0x121] sm:$0xff]
        %v709 = vld [vmem:[#allocation2 + $0x129] sm:$0xff]
        %v710 = vld [vmem:[#allocation2 + $0x139] sm:$0xff]
        %v711 = vld [vmem:[#allocation2 + $0x141] sm:$0xff]
        %v712 = vld [vmem:[#allocation2 + $0x151] sm:$0xff]
        %v713 = vld [vmem:[#allocation2 + $0x159] sm:$0xff]
        %v714 = vld [vmem:[#allocation2 + $0x169] sm:$0xff]
        %v715 = vld [vmem:[#allocation2 + $0x171] sm:$0xff]
        %v716 = vperm.slane %v505, 1
        %v717 = vmul.f32 %v684, %v716
        %v718 = vmul.f32 %v685, %v716
        %v719 = vmul.f32 %v686, %v716
        %v720 = vmul.f32 %v687, %v716
        %v721 = vmul.f32 %v688, %v716
        %v722 = vmul.f32 %v689, %v716
        %v723 = vmul.f32 %v690, %v716
        %v724 = vmul.f32 %v691, %v716
        %v725 = vmul.f32 %v692, %v716
        %v726 = vmul.f32 %v693, %v716
        %v727 = vmul.f32 %v694, %v716
        %v728 = vmul.f32 %v695, %v716
        %v729 = vmul.f32 %v696, %v716
        %v730 = vmul.f32 %v697, %v716
        %v731 = vmul.f32 %v698, %v716
        %v732 = vmul.f32 %v699, %v716
        %v733 = vmul.f32 %v700, %v716
        %v734 = vmul.f32 %v701, %v716
        %v735 = vmul.f32 %v702, %v716
        %v736 = vmul.f32 %v703, %v716
        %v737 = vmul.f32 %v704, %v716
        %v738 = vmul.f32 %v705, %v716
        %v739 = vmul.f32 %v706, %v716
        %v740 = vmul.f32 %v707, %v716
        %v741 = vmul.f32 %v708, %v716
        %v742 = vmul.f32 %v709, %v716
        %v743 = vmul.f32 %v710, %v716
        %v744 = vmul.f32 %v711, %v716
        %v745 = vmul.f32 %v712, %v716
        %v746 = vmul.f32 %v713, %v716
        %v747 = vmul.f32 %v714, %v716
        %v748 = vmul.f32 %v715, %v716
        %v749 = vadd.f32 %v652, %v717
        %v750 = vadd.f32 %v653, %v718
        %v751 = vadd.f32 %v654, %v719
        %v752 = vadd.f32 %v655, %v720
        %v753 = vadd.f32 %v656, %v721
        %v754 = vadd.f32 %v657, %v722
        %v755 = vadd.f32 %v658, %v723
        %v756 = vadd.f32 %v659, %v724
        %v757 = vadd.f32 %v660, %v725
        %v758 = vadd.f32 %v661, %v726
        %v759 = vadd.f32 %v662, %v727
        %v760 = vadd.f32 %v663, %v728
        %v761 = vadd.f32 %v664, %v729
        %v762 = vadd.f32 %v665, %v730
        %v763 = vadd.f32 %v666, %v731
        %v764 = vadd.f32 %v667, %v732
        %v765 = vadd.f32 %v668, %v733
        %v766 = vadd.f32 %v669, %v734
        %v767 = vadd.f32 %v670, %v735
        %v768 = vadd.f32 %v671, %v736
        %v769 = vadd.f32 %v672, %v737
        %v770 = vadd.f32 %v673, %v738
        %v771 = vadd.f32 %v674, %v739
        %v772 = vadd.f32 %v675, %v740
        %v773 = vadd.f32 %v676, %v741
        %v774 = vadd.f32 %v677, %v742
        %v775 = vadd.f32 %v678, %v743
        %v776 = vadd.f32 %v679, %v744
        %v777 = vadd.f32 %v680, %v745
        %v778 = vadd.f32 %v681, %v746
        %v779 = vadd.f32 %v682, %v747
        %v780 = vadd.f32 %v683, %v748
        %v781 = vld [vmem:[#allocation2 + $0x2] sm:$0xff]
        %v782 = vld [vmem:[#allocation2 + $0xa] sm:$0xff]
        %v783 = vld [vmem:[#allocation2 + $0x1a] sm:$0xff]
        %v784 = vld [vmem:[#allocation2 + $0x22] sm:$0xff]
        %v785 = vld [vmem:[#allocation2 + $0x32] sm:$0xff]
        %v786 = vld [vmem:[#allocation2 + $0x3a] sm:$0xff]
        %v787 = vld [vmem:[#allocation2 + $0x4a] sm:$0xff]
        %v788 = vld [vmem:[#allocation2 + $0x52] sm:$0xff]
        %v789 = vld [vmem:[#allocation2 + $0x62] sm:$0xff]
        %v790 = vld [vmem:[#allocation2 + $0x6a] sm:$0xff]
        %v791 = vld [vmem:[#allocation2 + $0x7a] sm:$0xff]
        %v792 = vld [vmem:[#allocation2 + $0x82] sm:$0xff]
        %v793 = vld [vmem:[#allocation2 + $0x92] sm:$0xff]
        %v794 = vld [vmem:[#allocation2 + $0x9a] sm:$0xff]
        %v795 = vld [vmem:[#allocation2 + $0xaa] sm:$0xff]
        %v796 = vld [vmem:[#allocation2 + $0xb2] sm:$0xff]
        %v797 = vld [vmem:[#allocation2 + $0xc2] sm:$0xff]
        %v798 = vld [vmem:[#allocation2 + $0xca] sm:$0xff]
        %v799 = vld [vmem:[#allocation2 + $0xda] sm:$0xff]
        %v800 = vld [vmem:[#allocation2 + $0xe2] sm:$0xff]
        %v801 = vld [vmem:[#allocation2 + $0xf2] sm:$0xff]
        %v802 = vld [vmem:[#allocation2 + $0xfa] sm:$0xff]
        %v803 = vld [vmem:[#allocation2 + $0x10a] sm:$0xff]
        %v804 = vld [vmem:[#allocation2 + $0x112] sm:$0xff]
        %v805 = vld [vmem:[#allocation2 + $0x122] sm:$0xff]
        %v806 = vld [vmem:[#allocation2 + $0x12a] sm:$0xff]
        %v807 = vld [vmem:[#allocation2 + $0x13a] sm:$0xff]
        %v808 = vld [vmem:[#allocation2 + $0x142] sm:$0xff]
        %v809 = vld [vmem:[#allocation2 + $0x152] sm:$0xff]
        %v810 = vld [vmem:[#allocation2 + $0x15a] sm:$0xff]
        %v811 = vld [vmem:[#allocation2 + $0x16a] sm:$0xff]
        %v812 = vld [vmem:[#allocation2 + $0x172] sm:$0xff]
        %v813 = vperm.slane %v505, 2
        %v814 = vmul.f32 %v781, %v813
        %v815 = vmul.f32 %v782, %v813
        %v816 = vmul.f32 %v783, %v813
        %v817 = vmul.f32 %v784, %v813
        %v818 = vmul.f32 %v785, %v813
        %v819 = vmul.f32 %v786, %v813
        %v820 = vmul.f32 %v787, %v813
        %v821 = vmul.f32 %v788, %v813
        %v822 = vmul.f32 %v789, %v813
        %v823 = vmul.f32 %v790, %v813
        %v824 = vmul.f32 %v791, %v813
        %v825 = vmul.f32 %v792, %v813
        %v826 = vmul.f32 %v793, %v813
        %v827 = vmul.f32 %v794, %v813
        %v828 = vmul.f32 %v795, %v813
        %v829 = vmul.f32 %v796, %v813
        %v830 = vmul.f32 %v797, %v813
        %v831 = vmul.f32 %v798, %v813
        %v832 = vmul.f32 %v799, %v813
        %v833 = vmul.f32 %v800, %v813
        %v834 = vmul.f32 %v801, %v813
        %v835 = vmul.f32 %v802, %v813
        %v836 = vmul.f32 %v803, %v813
        %v837 = vmul.f32 %v804, %v813
        %v838 = vmul.f32 %v805, %v813
        %v839 = vmul.f32 %v806, %v813
        %v840 = vmul.f32 %v807, %v813
        %v841 = vmul.f32 %v808, %v813
        %v842 = vmul.f32 %v809, %v813
        %v843 = vmul.f32 %v810, %v813
        %v844 = vmul.f32 %v811, %v813
        %v845 = vmul.f32 %v812, %v813
        %v846 = vadd.f32 %v749, %v814
        %v847 = vadd.f32 %v750, %v815
        %v848 = vadd.f32 %v751, %v816
        %v849 = vadd.f32 %v752, %v817
        %v850 = vadd.f32 %v753, %v818
        %v851 = vadd.f32 %v754, %v819
        %v852 = vadd.f32 %v755, %v820
        %v853 = vadd.f32 %v756, %v821
        %v854 = vadd.f32 %v757, %v822
        %v855 = vadd.f32 %v758, %v823
        %v856 = vadd.f32 %v759, %v824
        %v857 = vadd.f32 %v760, %v825
        %v858 = vadd.f32 %v761, %v826
        %v859 = vadd.f32 %v762, %v827
        %v860 = vadd.f32 %v763, %v828
        %v861 = vadd.f32 %v764, %v829
        %v862 = vadd.f32 %v765, %v830
        %v863 = vadd.f32 %v766, %v831
        %v864 = vadd.f32 %v767, %v832
        %v865 = vadd.f32 %v768, %v833
        %v866 = vadd.f32 %v769, %v834
        %v867 = vadd.f32 %v770, %v835
        %v868 = vadd.f32 %v771, %v836
        %v869 = vadd.f32 %v772, %v837
        %v870 = vadd.f32 %v773, %v838
        %v871 = vadd.f32 %v774, %v839
        %v872 = vadd.f32 %v775, %v840
        %v873 = vadd.f32 %v776, %v841
        %v874 = vadd.f32 %v777, %v842
        %v875 = vadd.f32 %v778, %v843
        %v876 = vadd.f32 %v779, %v844
        %v877 = vadd.f32 %v780, %v845
        %v878 = vld [vmem:[%s554] sm:$0xff]
        %v879 = vld [vmem:[%s554 + $0x8] sm:$0xff]
        %v880 = vld [vmem:[%s554 + $0x18] sm:$0xff]
        %v881 = vld [vmem:[%s554 + $0x20] sm:$0xff]
        %v882 = vld [vmem:[%s554 + $0x30] sm:$0xff]
        %v883 = vld [vmem:[%s554 + $0x38] sm:$0xff]
        %v884 = vld [vmem:[%s554 + $0x48] sm:$0xff]
        %v885 = vld [vmem:[%s554 + $0x50] sm:$0xff]
        %v886 = vld [vmem:[%s554 + $0x60] sm:$0xff]
        %v887 = vld [vmem:[%s554 + $0x68] sm:$0xff]
        %v888 = vld [vmem:[%s554 + $0x78] sm:$0xff]
        %v889 = vld [vmem:[%s554 + $0x80] sm:$0xff]
        %v890 = vld [vmem:[%s554 + $0x90] sm:$0xff]
        %v891 = vld [vmem:[%s554 + $0x98] sm:$0xff]
        %v892 = vld [vmem:[%s554 + $0xa8] sm:$0xff]
        %v893 = vld [vmem:[%s554 + $0xb0] sm:$0xff]
        %v894 = vld [vmem:[%s554 + $0xc0] sm:$0xff]
        %v895 = vld [vmem:[%s554 + $0xc8] sm:$0xff]
        %v896 = vld [vmem:[%s554 + $0xd8] sm:$0xff]
        %v897 = vld [vmem:[%s554 + $0xe0] sm:$0xff]
        %v898 = vld [vmem:[%s554 + $0xf0] sm:$0xff]
        %v899 = vld [vmem:[%s554 + $0xf8] sm:$0xff]
        %v900 = vld [vmem:[%s554 + $0x108] sm:$0xff]
        %v901 = vld [vmem:[%s554 + $0x110] sm:$0xff]
        %v902 = vld [vmem:[%s554 + $0x120] sm:$0xff]
        %v903 = vld [vmem:[%s554 + $0x128] sm:$0xff]
        %v904 = vld [vmem:[%s554 + $0x138] sm:$0xff]
        %v905 = vld [vmem:[%s554 + $0x140] sm:$0xff]
        %v906 = vld [vmem:[%s554 + $0x150] sm:$0xff]
        %v907 = vld [vmem:[%s554 + $0x158] sm:$0xff]
        %v908 = vld [vmem:[%s554 + $0x168] sm:$0xff]
        %v909 = vld [vmem:[%s554 + $0x170] sm:$0xff]
        %v910 = vperm.slane %v506, 0
        %v911 = vmul.f32 %v878, %v910
        %v912 = vmul.f32 %v879, %v910
        %v913 = vmul.f32 %v880, %v910
        %v914 = vmul.f32 %v881, %v910
        %v915 = vmul.f32 %v882, %v910
        %v916 = vmul.f32 %v883, %v910
        %v917 = vmul.f32 %v884, %v910
        %v918 = vmul.f32 %v885, %v910
        %v919 = vmul.f32 %v886, %v910
        %v920 = vmul.f32 %v887, %v910
        %v921 = vmul.f32 %v888, %v910
        %v922 = vmul.f32 %v889, %v910
        %v923 = vmul.f32 %v890, %v910
        %v924 = vmul.f32 %v891, %v910
        %v925 = vmul.f32 %v892, %v910
        %v926 = vmul.f32 %v893, %v910
        %v927 = vmul.f32 %v894, %v910
        %v928 = vmul.f32 %v895, %v910
        %v929 = vmul.f32 %v896, %v910
        %v930 = vmul.f32 %v897, %v910
        %v931 = vmul.f32 %v898, %v910
        %v932 = vmul.f32 %v899, %v910
        %v933 = vmul.f32 %v900, %v910
        %v934 = vmul.f32 %v901, %v910
        %v935 = vmul.f32 %v902, %v910
        %v936 = vmul.f32 %v903, %v910
        %v937 = vmul.f32 %v904, %v910
        %v938 = vmul.f32 %v905, %v910
        %v939 = vmul.f32 %v906, %v910
        %v940 = vmul.f32 %v907, %v910
        %v941 = vmul.f32 %v908, %v910
        %v942 = vmul.f32 %v909, %v910
        %v943 = vadd.f32 %v846, %v911
        %v944 = vadd.f32 %v847, %v912
        %v945 = vadd.f32 %v848, %v913
        %v946 = vadd.f32 %v849, %v914
        %v947 = vadd.f32 %v850, %v915
        %v948 = vadd.f32 %v851, %v916
        %v949 = vadd.f32 %v852, %v917
        %v950 = vadd.f32 %v853, %v918
        %v951 = vadd.f32 %v854, %v919
        %v952 = vadd.f32 %v855, %v920
        %v953 = vadd.f32 %v856, %v921
        %v954 = vadd.f32 %v857, %v922
        %v955 = vadd.f32 %v858, %v923
        %v956 = vadd.f32 %v859, %v924
        %v957 = vadd.f32 %v860, %v925
        %v958 = vadd.f32 %v861, %v926
        %v959 = vadd.f32 %v862, %v927
        %v960 = vadd.f32 %v863, %v928
        %v961 = vadd.f32 %v864, %v929
        %v962 = vadd.f32 %v865, %v930
        %v963 = vadd.f32 %v866, %v931
        %v964 = vadd.f32 %v867, %v932
        %v965 = vadd.f32 %v868, %v933
        %v966 = vadd.f32 %v869, %v934
        %v967 = vadd.f32 %v870, %v935
        %v968 = vadd.f32 %v871, %v936
        %v969 = vadd.f32 %v872, %v937
        %v970 = vadd.f32 %v873, %v938
        %v971 = vadd.f32 %v874, %v939
        %v972 = vadd.f32 %v875, %v940
        %v973 = vadd.f32 %v876, %v941
        %v974 = vadd.f32 %v877, %v942
        %v975 = vld [vmem:[%s554 + $0x1] sm:$0xff]
        %v976 = vld [vmem:[%s554 + $0x9] sm:$0xff]
        %v977 = vld [vmem:[%s554 + $0x19] sm:$0xff]
        %v978 = vld [vmem:[%s554 + $0x21] sm:$0xff]
        %v979 = vld [vmem:[%s554 + $0x31] sm:$0xff]
        %v980 = vld [vmem:[%s554 + $0x39] sm:$0xff]
        %v981 = vld [vmem:[%s554 + $0x49] sm:$0xff]
        %v982 = vld [vmem:[%s554 + $0x51] sm:$0xff]
        %v983 = vld [vmem:[%s554 + $0x61] sm:$0xff]
        %v984 = vld [vmem:[%s554 + $0x69] sm:$0xff]
        %v985 = vld [vmem:[%s554 + $0x79] sm:$0xff]
        %v986 = vld [vmem:[%s554 + $0x81] sm:$0xff]
        %v987 = vld [vmem:[%s554 + $0x91] sm:$0xff]
        %v988 = vld [vmem:[%s554 + $0x99] sm:$0xff]
        %v989 = vld [vmem:[%s554 + $0xa9] sm:$0xff]
        %v990 = vld [vmem:[%s554 + $0xb1] sm:$0xff]
        %v991 = vld [vmem:[%s554 + $0xc1] sm:$0xff]
        %v992 = vld [vmem:[%s554 + $0xc9] sm:$0xff]
        %v993 = vld [vmem:[%s554 + $0xd9] sm:$0xff]
        %v994 = vld [vmem:[%s554 + $0xe1] sm:$0xff]
        %v995 = vld [vmem:[%s554 + $0xf1] sm:$0xff]
        %v996 = vld [vmem:[%s554 + $0xf9] sm:$0xff]
        %v997 = vld [vmem:[%s554 + $0x109] sm:$0xff]
        %v998 = vld [vmem:[%s554 + $0x111] sm:$0xff]
        %v999 = vld [vmem:[%s554 + $0x121] sm:$0xff]
        %v1000 = vld [vmem:[%s554 + $0x129] sm:$0xff]
        %v1001 = vld [vmem:[%s554 + $0x139] sm:$0xff]
        %v1002 = vld [vmem:[%s554 + $0x141] sm:$0xff]
        %v1003 = vld [vmem:[%s554 + $0x151] sm:$0xff]
        %v1004 = vld [vmem:[%s554 + $0x159] sm:$0xff]
        %v1005 = vld [vmem:[%s554 + $0x169] sm:$0xff]
        %v1006 = vld [vmem:[%s554 + $0x171] sm:$0xff]
        %v1007 = vperm.slane %v506, 1
        %v1008 = vmul.f32 %v975, %v1007
        %v1009 = vmul.f32 %v976, %v1007
        %v1010 = vmul.f32 %v977, %v1007
        %v1011 = vmul.f32 %v978, %v1007
        %v1012 = vmul.f32 %v979, %v1007
        %v1013 = vmul.f32 %v980, %v1007
        %v1014 = vmul.f32 %v981, %v1007
        %v1015 = vmul.f32 %v982, %v1007
        %v1016 = vmul.f32 %v983, %v1007
        %v1017 = vmul.f32 %v984, %v1007
        %v1018 = vmul.f32 %v985, %v1007
        %v1019 = vmul.f32 %v986, %v1007
        %v1020 = vmul.f32 %v987, %v1007
        %v1021 = vmul.f32 %v988, %v1007
        %v1022 = vmul.f32 %v989, %v1007
        %v1023 = vmul.f32 %v990, %v1007
        %v1024 = vmul.f32 %v991, %v1007
        %v1025 = vmul.f32 %v992, %v1007
        %v1026 = vmul.f32 %v993, %v1007
        %v1027 = vmul.f32 %v994, %v1007
        %v1028 = vmul.f32 %v995, %v1007
        %v1029 = vmul.f32 %v996, %v1007
        %v1030 = vmul.f32 %v997, %v1007
        %v1031 = vmul.f32 %v998, %v1007
        %v1032 = vmul.f32 %v999, %v1007
        %v1033 = vmul.f32 %v1000, %v1007
        %v1034 = vmul.f32 %v1001, %v1007
        %v1035 = vmul.f32 %v1002, %v1007
        %v1036 = vmul.f32 %v1003, %v1007
        %v1037 = vmul.f32 %v1004, %v1007
        %v1038 = vmul.f32 %v1005, %v1007
        %v1039 = vmul.f32 %v1006, %v1007
        %v1040 = vadd.f32 %v943, %v1008
        %v1041 = vadd.f32 %v944, %v1009
        %v1042 = vadd.f32 %v945, %v1010
        %v1043 = vadd.f32 %v946, %v1011
        %v1044 = vadd.f32 %v947, %v1012
        %v1045 = vadd.f32 %v948, %v1013
        %v1046 = vadd.f32 %v949, %v1014
        %v1047 = vadd.f32 %v950, %v1015
        %v1048 = vadd.f32 %v951, %v1016
        %v1049 = vadd.f32 %v952, %v1017
        %v1050 = vadd.f32 %v953, %v1018
        %v1051 = vadd.f32 %v954, %v1019
        %v1052 = vadd.f32 %v955, %v1020
        %v1053 = vadd.f32 %v956, %v1021
        %v1054 = vadd.f32 %v957, %v1022
        %v1055 = vadd.f32 %v958, %v1023
        %v1056 = vadd.f32 %v959, %v1024
        %v1057 = vadd.f32 %v960, %v1025
        %v1058 = vadd.f32 %v961, %v1026
        %v1059 = vadd.f32 %v962, %v1027
        %v1060 = vadd.f32 %v963, %v1028
        %v1061 = vadd.f32 %v964, %v1029
        %v1062 = vadd.f32 %v965, %v1030
        %v1063 = vadd.f32 %v966, %v1031
        %v1064 = vadd.f32 %v967, %v1032
        %v1065 = vadd.f32 %v968, %v1033
        %v1066 = vadd.f32 %v969, %v1034
        %v1067 = vadd.f32 %v970, %v1035
        %v1068 = vadd.f32 %v971, %v1036
        %v1069 = vadd.f32 %v972, %v1037
        %v1070 = vadd.f32 %v973, %v1038
        %v1071 = vadd.f32 %v974, %v1039
        %v1072 = vld [vmem:[%s554 + $0x2] sm:$0xff]
        %v1073 = vld [vmem:[%s554 + $0xa] sm:$0xff]
        %v1074 = vld [vmem:[%s554 + $0x1a] sm:$0xff]
        %v1075 = vld [vmem:[%s554 + $0x22] sm:$0xff]
        %v1076 = vld [vmem:[%s554 + $0x32] sm:$0xff]
        %v1077 = vld [vmem:[%s554 + $0x3a] sm:$0xff]
        %v1078 = vld [vmem:[%s554 + $0x4a] sm:$0xff]
        %v1079 = vld [vmem:[%s554 + $0x52] sm:$0xff]
        %v1080 = vld [vmem:[%s554 + $0x62] sm:$0xff]
        %v1081 = vld [vmem:[%s554 + $0x6a] sm:$0xff]
        %v1082 = vld [vmem:[%s554 + $0x7a] sm:$0xff]
        %v1083 = vld [vmem:[%s554 + $0x82] sm:$0xff]
        %v1084 = vld [vmem:[%s554 + $0x92] sm:$0xff]
        %v1085 = vld [vmem:[%s554 + $0x9a] sm:$0xff]
        %v1086 = vld [vmem:[%s554 + $0xaa] sm:$0xff]
        %v1087 = vld [vmem:[%s554 + $0xb2] sm:$0xff]
        %v1088 = vld [vmem:[%s554 + $0xc2] sm:$0xff]
        %v1089 = vld [vmem:[%s554 + $0xca] sm:$0xff]
        %v1090 = vld [vmem:[%s554 + $0xda] sm:$0xff]
        %v1091 = vld [vmem:[%s554 + $0xe2] sm:$0xff]
        %v1092 = vld [vmem:[%s554 + $0xf2] sm:$0xff]
        %v1093 = vld [vmem:[%s554 + $0xfa] sm:$0xff]
        %v1094 = vld [vmem:[%s554 + $0x10a] sm:$0xff]
        %v1095 = vld [vmem:[%s554 + $0x112] sm:$0xff]
        %v1096 = vld [vmem:[%s554 + $0x122] sm:$0xff]
        %v1097 = vld [vmem:[%s554 + $0x12a] sm:$0xff]
        %v1098 = vld [vmem:[%s554 + $0x13a] sm:$0xff]
        %v1099 = vld [vmem:[%s554 + $0x142] sm:$0xff]
        %v1100 = vld [vmem:[%s554 + $0x152] sm:$0xff]
        %v1101 = vld [vmem:[%s554 + $0x15a] sm:$0xff]
        %v1102 = vld [vmem:[%s554 + $0x16a] sm:$0xff]
        %v1103 = vld [vmem:[%s554 + $0x172] sm:$0xff]
        %v1104 = vperm.slane %v506, 2
        %v1105 = vmul.f32 %v1072, %v1104
        %v1106 = vmul.f32 %v1073, %v1104
        %v1107 = vmul.f32 %v1074, %v1104
        %v1108 = vmul.f32 %v1075, %v1104
        %v1109 = vmul.f32 %v1076, %v1104
        %v1110 = vmul.f32 %v1077, %v1104
        %v1111 = vmul.f32 %v1078, %v1104
        %v1112 = vmul.f32 %v1079, %v1104
        %v1113 = vmul.f32 %v1080, %v1104
        %v1114 = vmul.f32 %v1081, %v1104
        %v1115 = vmul.f32 %v1082, %v1104
        %v1116 = vmul.f32 %v1083, %v1104
        %v1117 = vmul.f32 %v1084, %v1104
        %v1118 = vmul.f32 %v1085, %v1104
        %v1119 = vmul.f32 %v1086, %v1104
        %v1120 = vmul.f32 %v1087, %v1104
        %v1121 = vmul.f32 %v1088, %v1104
        %v1122 = vmul.f32 %v1089, %v1104
        %v1123 = vmul.f32 %v1090, %v1104
        %v1124 = vmul.f32 %v1091, %v1104
        %v1125 = vmul.f32 %v1092, %v1104
        %v1126 = vmul.f32 %v1093, %v1104
        %v1127 = vmul.f32 %v1094, %v1104
        %v1128 = vmul.f32 %v1095, %v1104
        %v1129 = vmul.f32 %v1096, %v1104
        %v1130 = vmul.f32 %v1097, %v1104
        %v1131 = vmul.f32 %v1098, %v1104
        %v1132 = vmul.f32 %v1099, %v1104
        %v1133 = vmul.f32 %v1100, %v1104
        %v1134 = vmul.f32 %v1101, %v1104
        %v1135 = vmul.f32 %v1102, %v1104
        %v1136 = vmul.f32 %v1103, %v1104
        %v1137 = vadd.f32 %v1040, %v1105
        %v1138 = vadd.f32 %v1041, %v1106
        %v1139 = vadd.f32 %v1042, %v1107
        %v1140 = vadd.f32 %v1043, %v1108
        %v1141 = vadd.f32 %v1044, %v1109
        %v1142 = vadd.f32 %v1045, %v1110
        %v1143 = vadd.f32 %v1046, %v1111
        %v1144 = vadd.f32 %v1047, %v1112
        %v1145 = vadd.f32 %v1048, %v1113
        %v1146 = vadd.f32 %v1049, %v1114
        %v1147 = vadd.f32 %v1050, %v1115
        %v1148 = vadd.f32 %v1051, %v1116
        %v1149 = vadd.f32 %v1052, %v1117
        %v1150 = vadd.f32 %v1053, %v1118
        %v1151 = vadd.f32 %v1054, %v1119
        %v1152 = vadd.f32 %v1055, %v1120
        %v1153 = vadd.f32 %v1056, %v1121
        %v1154 = vadd.f32 %v1057, %v1122
        %v1155 = vadd.f32 %v1058, %v1123
        %v1156 = vadd.f32 %v1059, %v1124
        %v1157 = vadd.f32 %v1060, %v1125
        %v1158 = vadd.f32 %v1061, %v1126
        %v1159 = vadd.f32 %v1062, %v1127
        %v1160 = vadd.f32 %v1063, %v1128
        %v1161 = vadd.f32 %v1064, %v1129
        %v1162 = vadd.f32 %v1065, %v1130
        %v1163 = vadd.f32 %v1066, %v1131
        %v1164 = vadd.f32 %v1067, %v1132
        %v1165 = vadd.f32 %v1068, %v1133
        %v1166 = vadd.f32 %v1069, %v1134
        %v1167 = vadd.f32 %v1070, %v1135
        %v1168 = vadd.f32 %v1071, %v1136
        %s1169 = scalar_lea.vmem [#allocation2], 48
        %v1170 = vld [vmem:[%s1169] sm:$0xff]
        %v1171 = vld [vmem:[%s1169 + $0x8] sm:$0xff]
        %v1172 = vld [vmem:[%s1169 + $0x18] sm:$0xff]
        %v1173 = vld [vmem:[%s1169 + $0x20] sm:$0xff]
        %v1174 = vld [vmem:[%s1169 + $0x30] sm:$0xff]
        %v1175 = vld [vmem:[%s1169 + $0x38] sm:$0xff]
        %v1176 = vld [vmem:[%s1169 + $0x48] sm:$0xff]
        %v1177 = vld [vmem:[%s1169 + $0x50] sm:$0xff]
        %v1178 = vld [vmem:[%s1169 + $0x60] sm:$0xff]
        %v1179 = vld [vmem:[%s1169 + $0x68] sm:$0xff]
        %v1180 = vld [vmem:[%s1169 + $0x78] sm:$0xff]
        %v1181 = vld [vmem:[%s1169 + $0x80] sm:$0xff]
        %v1182 = vld [vmem:[%s1169 + $0x90] sm:$0xff]
        %v1183 = vld [vmem:[%s1169 + $0x98] sm:$0xff]
        %v1184 = vld [vmem:[%s1169 + $0xa8] sm:$0xff]
        %v1185 = vld [vmem:[%s1169 + $0xb0] sm:$0xff]
        %v1186 = vld [vmem:[%s1169 + $0xc0] sm:$0xff]
        %v1187 = vld [vmem:[%s1169 + $0xc8] sm:$0xff]
        %v1188 = vld [vmem:[%s1169 + $0xd8] sm:$0xff]
        %v1189 = vld [vmem:[%s1169 + $0xe0] sm:$0xff]
        %v1190 = vld [vmem:[%s1169 + $0xf0] sm:$0xff]
        %v1191 = vld [vmem:[%s1169 + $0xf8] sm:$0xff]
        %v1192 = vld [vmem:[%s1169 + $0x108] sm:$0xff]
        %v1193 = vld [vmem:[%s1169 + $0x110] sm:$0xff]
        %v1194 = vld [vmem:[%s1169 + $0x120] sm:$0xff]
        %v1195 = vld [vmem:[%s1169 + $0x128] sm:$0xff]
        %v1196 = vld [vmem:[%s1169 + $0x138] sm:$0xff]
        %v1197 = vld [vmem:[%s1169 + $0x140] sm:$0xff]
        %v1198 = vld [vmem:[%s1169 + $0x150] sm:$0xff]
        %v1199 = vld [vmem:[%s1169 + $0x158] sm:$0xff]
        %v1200 = vld [vmem:[%s1169 + $0x168] sm:$0xff]
        %v1201 = vld [vmem:[%s1169 + $0x170] sm:$0xff]
        %v1202 = vperm.slane %v507, 0
        %v1203 = vmul.f32 %v1170, %v1202
        %v1204 = vmul.f32 %v1171, %v1202
        %v1205 = vmul.f32 %v1172, %v1202
        %v1206 = vmul.f32 %v1173, %v1202
        %v1207 = vmul.f32 %v1174, %v1202
        %v1208 = vmul.f32 %v1175, %v1202
        %v1209 = vmul.f32 %v1176, %v1202
        %v1210 = vmul.f32 %v1177, %v1202
        %v1211 = vmul.f32 %v1178, %v1202
        %v1212 = vmul.f32 %v1179, %v1202
        %v1213 = vmul.f32 %v1180, %v1202
        %v1214 = vmul.f32 %v1181, %v1202
        %v1215 = vmul.f32 %v1182, %v1202
        %v1216 = vmul.f32 %v1183, %v1202
        %v1217 = vmul.f32 %v1184, %v1202
        %v1218 = vmul.f32 %v1185, %v1202
        %v1219 = vmul.f32 %v1186, %v1202
        %v1220 = vmul.f32 %v1187, %v1202
        %v1221 = vmul.f32 %v1188, %v1202
        %v1222 = vmul.f32 %v1189, %v1202
        %v1223 = vmul.f32 %v1190, %v1202
        %v1224 = vmul.f32 %v1191, %v1202
        %v1225 = vmul.f32 %v1192, %v1202
        %v1226 = vmul.f32 %v1193, %v1202
        %v1227 = vmul.f32 %v1194, %v1202
        %v1228 = vmul.f32 %v1195, %v1202
        %v1229 = vmul.f32 %v1196, %v1202
        %v1230 = vmul.f32 %v1197, %v1202
        %v1231 = vmul.f32 %v1198, %v1202
        %v1232 = vmul.f32 %v1199, %v1202
        %v1233 = vmul.f32 %v1200, %v1202
        %v1234 = vmul.f32 %v1201, %v1202
        %v1235 = vadd.f32 %v1137, %v1203
        %v1236 = vadd.f32 %v1138, %v1204
        %v1237 = vadd.f32 %v1139, %v1205
        %v1238 = vadd.f32 %v1140, %v1206
        %v1239 = vadd.f32 %v1141, %v1207
        %v1240 = vadd.f32 %v1142, %v1208
        %v1241 = vadd.f32 %v1143, %v1209
        %v1242 = vadd.f32 %v1144, %v1210
        %v1243 = vadd.f32 %v1145, %v1211
        %v1244 = vadd.f32 %v1146, %v1212
        %v1245 = vadd.f32 %v1147, %v1213
        %v1246 = vadd.f32 %v1148, %v1214
        %v1247 = vadd.f32 %v1149, %v1215
        %v1248 = vadd.f32 %v1150, %v1216
        %v1249 = vadd.f32 %v1151, %v1217
        %v1250 = vadd.f32 %v1152, %v1218
        %v1251 = vadd.f32 %v1153, %v1219
        %v1252 = vadd.f32 %v1154, %v1220
        %v1253 = vadd.f32 %v1155, %v1221
        %v1254 = vadd.f32 %v1156, %v1222
        %v1255 = vadd.f32 %v1157, %v1223
        %v1256 = vadd.f32 %v1158, %v1224
        %v1257 = vadd.f32 %v1159, %v1225
        %v1258 = vadd.f32 %v1160, %v1226
        %v1259 = vadd.f32 %v1161, %v1227
        %v1260 = vadd.f32 %v1162, %v1228
        %v1261 = vadd.f32 %v1163, %v1229
        %v1262 = vadd.f32 %v1164, %v1230
        %v1263 = vadd.f32 %v1165, %v1231
        %v1264 = vadd.f32 %v1166, %v1232
        %v1265 = vadd.f32 %v1167, %v1233
        %v1266 = vadd.f32 %v1168, %v1234
        %v1267 = vld [vmem:[%s1169 + $0x1] sm:$0xff]
        %v1268 = vld [vmem:[%s1169 + $0x9] sm:$0xff]
        %v1269 = vld [vmem:[%s1169 + $0x19] sm:$0xff]
        %v1270 = vld [vmem:[%s1169 + $0x21] sm:$0xff]
        %v1271 = vld [vmem:[%s1169 + $0x31] sm:$0xff]
        %v1272 = vld [vmem:[%s1169 + $0x39] sm:$0xff]
        %v1273 = vld [vmem:[%s1169 + $0x49] sm:$0xff]
        %v1274 = vld [vmem:[%s1169 + $0x51] sm:$0xff]
        %v1275 = vld [vmem:[%s1169 + $0x61] sm:$0xff]
        %v1276 = vld [vmem:[%s1169 + $0x69] sm:$0xff]
        %v1277 = vld [vmem:[%s1169 + $0x79] sm:$0xff]
        %v1278 = vld [vmem:[%s1169 + $0x81] sm:$0xff]
        %v1279 = vld [vmem:[%s1169 + $0x91] sm:$0xff]
        %v1280 = vld [vmem:[%s1169 + $0x99] sm:$0xff]
        %v1281 = vld [vmem:[%s1169 + $0xa9] sm:$0xff]
        %v1282 = vld [vmem:[%s1169 + $0xb1] sm:$0xff]
        %v1283 = vld [vmem:[%s1169 + $0xc1] sm:$0xff]
        %v1284 = vld [vmem:[%s1169 + $0xc9] sm:$0xff]
        %v1285 = vld [vmem:[%s1169 + $0xd9] sm:$0xff]
        %v1286 = vld [vmem:[%s1169 + $0xe1] sm:$0xff]
        %v1287 = vld [vmem:[%s1169 + $0xf1] sm:$0xff]
        %v1288 = vld [vmem:[%s1169 + $0xf9] sm:$0xff]
        %v1289 = vld [vmem:[%s1169 + $0x109] sm:$0xff]
        %v1290 = vld [vmem:[%s1169 + $0x111] sm:$0xff]
        %v1291 = vld [vmem:[%s1169 + $0x121] sm:$0xff]
        %v1292 = vld [vmem:[%s1169 + $0x129] sm:$0xff]
        %v1293 = vld [vmem:[%s1169 + $0x139] sm:$0xff]
        %v1294 = vld [vmem:[%s1169 + $0x141] sm:$0xff]
        %v1295 = vld [vmem:[%s1169 + $0x151] sm:$0xff]
        %v1296 = vld [vmem:[%s1169 + $0x159] sm:$0xff]
        %v1297 = vld [vmem:[%s1169 + $0x169] sm:$0xff]
        %v1298 = vld [vmem:[%s1169 + $0x171] sm:$0xff]
        %v1299 = vperm.slane %v507, 1
        %v1300 = vmul.f32 %v1267, %v1299
        %v1301 = vmul.f32 %v1268, %v1299
        %v1302 = vmul.f32 %v1269, %v1299
        %v1303 = vmul.f32 %v1270, %v1299
        %v1304 = vmul.f32 %v1271, %v1299
        %v1305 = vmul.f32 %v1272, %v1299
        %v1306 = vmul.f32 %v1273, %v1299
        %v1307 = vmul.f32 %v1274, %v1299
        %v1308 = vmul.f32 %v1275, %v1299
        %v1309 = vmul.f32 %v1276, %v1299
        %v1310 = vmul.f32 %v1277, %v1299
        %v1311 = vmul.f32 %v1278, %v1299
        %v1312 = vmul.f32 %v1279, %v1299
        %v1313 = vmul.f32 %v1280, %v1299
        %v1314 = vmul.f32 %v1281, %v1299
        %v1315 = vmul.f32 %v1282, %v1299
        %v1316 = vmul.f32 %v1283, %v1299
        %v1317 = vmul.f32 %v1284, %v1299
        %v1318 = vmul.f32 %v1285, %v1299
        %v1319 = vmul.f32 %v1286, %v1299
        %v1320 = vmul.f32 %v1287, %v1299
        %v1321 = vmul.f32 %v1288, %v1299
        %v1322 = vmul.f32 %v1289, %v1299
        %v1323 = vmul.f32 %v1290, %v1299
        %v1324 = vmul.f32 %v1291, %v1299
        %v1325 = vmul.f32 %v1292, %v1299
        %v1326 = vmul.f32 %v1293, %v1299
        %v1327 = vmul.f32 %v1294, %v1299
        %v1328 = vmul.f32 %v1295, %v1299
        %v1329 = vmul.f32 %v1296, %v1299
        %v1330 = vmul.f32 %v1297, %v1299
        %v1331 = vmul.f32 %v1298, %v1299
        %v1332 = vadd.f32 %v1235, %v1300
        %v1333 = vadd.f32 %v1236, %v1301
        %v1334 = vadd.f32 %v1237, %v1302
        %v1335 = vadd.f32 %v1238, %v1303
        %v1336 = vadd.f32 %v1239, %v1304
        %v1337 = vadd.f32 %v1240, %v1305
        %v1338 = vadd.f32 %v1241, %v1306
        %v1339 = vadd.f32 %v1242, %v1307
        %v1340 = vadd.f32 %v1243, %v1308
        %v1341 = vadd.f32 %v1244, %v1309
        %v1342 = vadd.f32 %v1245, %v1310
        %v1343 = vadd.f32 %v1246, %v1311
        %v1344 = vadd.f32 %v1247, %v1312
        %v1345 = vadd.f32 %v1248, %v1313
        %v1346 = vadd.f32 %v1249, %v1314
        %v1347 = vadd.f32 %v1250, %v1315
        %v1348 = vadd.f32 %v1251, %v1316
        %v1349 = vadd.f32 %v1252, %v1317
        %v1350 = vadd.f32 %v1253, %v1318
        %v1351 = vadd.f32 %v1254, %v1319
        %v1352 = vadd.f32 %v1255, %v1320
        %v1353 = vadd.f32 %v1256, %v1321
        %v1354 = vadd.f32 %v1257, %v1322
        %v1355 = vadd.f32 %v1258, %v1323
        %v1356 = vadd.f32 %v1259, %v1324
        %v1357 = vadd.f32 %v1260, %v1325
        %v1358 = vadd.f32 %v1261, %v1326
        %v1359 = vadd.f32 %v1262, %v1327
        %v1360 = vadd.f32 %v1263, %v1328
        %v1361 = vadd.f32 %v1264, %v1329
        %v1362 = vadd.f32 %v1265, %v1330
        %v1363 = vadd.f32 %v1266, %v1331
        %v1364 = vld [vmem:[%s1169 + $0x2] sm:$0xff]
        %v1365 = vld [vmem:[%s1169 + $0xa] sm:$0xff]
        %v1366 = vld [vmem:[%s1169 + $0x1a] sm:$0xff]
        %v1367 = vld [vmem:[%s1169 + $0x22] sm:$0xff]
        %v1368 = vld [vmem:[%s1169 + $0x32] sm:$0xff]
        %v1369 = vld [vmem:[%s1169 + $0x3a] sm:$0xff]
        %v1370 = vld [vmem:[%s1169 + $0x4a] sm:$0xff]
        %v1371 = vld [vmem:[%s1169 + $0x52] sm:$0xff]
        %v1372 = vld [vmem:[%s1169 + $0x62] sm:$0xff]
        %v1373 = vld [vmem:[%s1169 + $0x6a] sm:$0xff]
        %v1374 = vld [vmem:[%s1169 + $0x7a] sm:$0xff]
        %v1375 = vld [vmem:[%s1169 + $0x82] sm:$0xff]
        %v1376 = vld [vmem:[%s1169 + $0x92] sm:$0xff]
        %v1377 = vld [vmem:[%s1169 + $0x9a] sm:$0xff]
        %v1378 = vld [vmem:[%s1169 + $0xaa] sm:$0xff]
        %v1379 = vld [vmem:[%s1169 + $0xb2] sm:$0xff]
        %v1380 = vld [vmem:[%s1169 + $0xc2] sm:$0xff]
        %v1381 = vld [vmem:[%s1169 + $0xca] sm:$0xff]
        %v1382 = vld [vmem:[%s1169 + $0xda] sm:$0xff]
        %v1383 = vld [vmem:[%s1169 + $0xe2] sm:$0xff]
        %v1384 = vld [vmem:[%s1169 + $0xf2] sm:$0xff]
        %v1385 = vld [vmem:[%s1169 + $0xfa] sm:$0xff]
        %v1386 = vld [vmem:[%s1169 + $0x10a] sm:$0xff]
        %v1387 = vld [vmem:[%s1169 + $0x112] sm:$0xff]
        %v1388 = vld [vmem:[%s1169 + $0x122] sm:$0xff]
        %v1389 = vld [vmem:[%s1169 + $0x12a] sm:$0xff]
        %v1390 = vld [vmem:[%s1169 + $0x13a] sm:$0xff]
        %v1391 = vld [vmem:[%s1169 + $0x142] sm:$0xff]
        %v1392 = vld [vmem:[%s1169 + $0x152] sm:$0xff]
        %v1393 = vld [vmem:[%s1169 + $0x15a] sm:$0xff]
        %v1394 = vld [vmem:[%s1169 + $0x16a] sm:$0xff]
        %v1395 = vld [vmem:[%s1169 + $0x172] sm:$0xff]
        %v1396 = vperm.slane %v507, 2
        %v1397 = vmul.f32 %v1364, %v1396
        %v1398 = vmul.f32 %v1365, %v1396
        %v1399 = vmul.f32 %v1366, %v1396
        %v1400 = vmul.f32 %v1367, %v1396
        %v1401 = vmul.f32 %v1368, %v1396
        %v1402 = vmul.f32 %v1369, %v1396
        %v1403 = vmul.f32 %v1370, %v1396
        %v1404 = vmul.f32 %v1371, %v1396
        %v1405 = vmul.f32 %v1372, %v1396
        %v1406 = vmul.f32 %v1373, %v1396
        %v1407 = vmul.f32 %v1374, %v1396
        %v1408 = vmul.f32 %v1375, %v1396
        %v1409 = vmul.f32 %v1376, %v1396
        %v1410 = vmul.f32 %v1377, %v1396
        %v1411 = vmul.f32 %v1378, %v1396
        %v1412 = vmul.f32 %v1379, %v1396
        %v1413 = vmul.f32 %v1380, %v1396
        %v1414 = vmul.f32 %v1381, %v1396
        %v1415 = vmul.f32 %v1382, %v1396
        %v1416 = vmul.f32 %v1383, %v1396
        %v1417 = vmul.f32 %v1384, %v1396
        %v1418 = vmul.f32 %v1385, %v1396
        %v1419 = vmul.f32 %v1386, %v1396
        %v1420 = vmul.f32 %v1387, %v1396
        %v1421 = vmul.f32 %v1388, %v1396
        %v1422 = vmul.f32 %v1389, %v1396
        %v1423 = vmul.f32 %v1390, %v1396
        %v1424 = vmul.f32 %v1391, %v1396
        %v1425 = vmul.f32 %v1392, %v1396
        %v1426 = vmul.f32 %v1393, %v1396
        %v1427 = vmul.f32 %v1394, %v1396
        %v1428 = vmul.f32 %v1395, %v1396
        %v1429 = vadd.f32 %v1332, %v1397
        %v1430 = vadd.f32 %v1333, %v1398
        %v1431 = vadd.f32 %v1334, %v1399
        %v1432 = vadd.f32 %v1335, %v1400
        %v1433 = vadd.f32 %v1336, %v1401
        %v1434 = vadd.f32 %v1337, %v1402
        %v1435 = vadd.f32 %v1338, %v1403
        %v1436 = vadd.f32 %v1339, %v1404
        %v1437 = vadd.f32 %v1340, %v1405
        %v1438 = vadd.f32 %v1341, %v1406
        %v1439 = vadd.f32 %v1342, %v1407
        %v1440 = vadd.f32 %v1343, %v1408
        %v1441 = vadd.f32 %v1344, %v1409
        %v1442 = vadd.f32 %v1345, %v1410
        %v1443 = vadd.f32 %v1346, %v1411
        %v1444 = vadd.f32 %v1347, %v1412
        %v1445 = vadd.f32 %v1348, %v1413
        %v1446 = vadd.f32 %v1349, %v1414
        %v1447 = vadd.f32 %v1350, %v1415
        %v1448 = vadd.f32 %v1351, %v1416
        %v1449 = vadd.f32 %v1352, %v1417
        %v1450 = vadd.f32 %v1353, %v1418
        %v1451 = vadd.f32 %v1354, %v1419
        %v1452 = vadd.f32 %v1355, %v1420
        %v1453 = vadd.f32 %v1356, %v1421
        %v1454 = vadd.f32 %v1357, %v1422
        %v1455 = vadd.f32 %v1358, %v1423
        %v1456 = vadd.f32 %v1359, %v1424
        %v1457 = vadd.f32 %v1360, %v1425
        %v1458 = vadd.f32 %v1361, %v1426
        %v1459 = vadd.f32 %v1362, %v1427
        %v1460 = vadd.f32 %v1363, %v1428
        %v1461 = vld [vmem:[%s4] sm:$0x1]
        %v1463 = vperm.slane %v1461, 0
        %v1465 = vadd.f32 %v1429, %v1463
        %v1466 = vadd.f32 %v1430, %v1463
        %v1467 = vadd.f32 %v1431, %v1463
        %v1468 = vadd.f32 %v1432, %v1463
        %v1469 = vadd.f32 %v1433, %v1463
        %v1470 = vadd.f32 %v1434, %v1463
        %v1471 = vadd.f32 %v1435, %v1463
        %v1472 = vadd.f32 %v1436, %v1463
        %v1473 = vadd.f32 %v1437, %v1463
        %v1474 = vadd.f32 %v1438, %v1463
        %v1475 = vadd.f32 %v1439, %v1463
        %v1476 = vadd.f32 %v1440, %v1463
        %v1477 = vadd.f32 %v1441, %v1463
        %v1478 = vadd.f32 %v1442, %v1463
        %v1479 = vadd.f32 %v1443, %v1463
        %v1480 = vadd.f32 %v1444, %v1463
        %v1481 = vadd.f32 %v1445, %v1463
        %v1482 = vadd.f32 %v1446, %v1463
        %v1483 = vadd.f32 %v1447, %v1463
        %v1484 = vadd.f32 %v1448, %v1463
        %v1485 = vadd.f32 %v1449, %v1463
        %v1486 = vadd.f32 %v1450, %v1463
        %v1487 = vadd.f32 %v1451, %v1463
        %v1488 = vadd.f32 %v1452, %v1463
        %v1489 = vadd.f32 %v1453, %v1463
        %v1490 = vadd.f32 %v1454, %v1463
        %v1491 = vadd.f32 %v1455, %v1463
        %v1492 = vadd.f32 %v1456, %v1463
        %v1493 = vadd.f32 %v1457, %v1463
        %v1494 = vadd.f32 %v1458, %v1463
        %v1495 = vadd.f32 %v1459, %v1463
        %v1496 = vadd.f32 %v1460, %v1463
        %1529 = vrot.lane.b32.xlu0 %v1465, 8
        %v1530 = vpop.permute.xlu0 %1529
        %1531 = vrot.lane.b32.xlu0 %v1466, 8
        %v1532 = vpop.permute.xlu0 %1531
        %1533 = vrot.lane.b32.xlu0 %v1467, 8
        %v1534 = vpop.permute.xlu0 %1533
        %1535 = vrot.lane.b32.xlu0 %v1468, 8
        %v1536 = vpop.permute.xlu0 %1535
        %1537 = vrot.lane.b32.xlu0 %v1469, 8
        %v1538 = vpop.permute.xlu0 %1537
        %1539 = vrot.lane.b32.xlu0 %v1470, 8
        %v1540 = vpop.permute.xlu0 %1539
        %1541 = vrot.lane.b32.xlu0 %v1471, 8
        %v1542 = vpop.permute.xlu0 %1541
        %1543 = vrot.lane.b32.xlu0 %v1472, 8
        %v1544 = vpop.permute.xlu0 %1543
        %1545 = vrot.lane.b32.xlu0 %v1473, 8
        %v1546 = vpop.permute.xlu0 %1545
        %1547 = vrot.lane.b32.xlu0 %v1474, 8
        %v1548 = vpop.permute.xlu0 %1547
        %1549 = vrot.lane.b32.xlu0 %v1475, 8
        %v1550 = vpop.permute.xlu0 %1549
        %1551 = vrot.lane.b32.xlu0 %v1476, 8
        %v1552 = vpop.permute.xlu0 %1551
        %1553 = vrot.lane.b32.xlu0 %v1477, 8
        %v1554 = vpop.permute.xlu0 %1553
        %1555 = vrot.lane.b32.xlu0 %v1478, 8
        %v1556 = vpop.permute.xlu0 %1555
        %1557 = vrot.lane.b32.xlu0 %v1479, 8
        %v1558 = vpop.permute.xlu0 %1557
        %1559 = vrot.lane.b32.xlu0 %v1480, 8
        %v1560 = vpop.permute.xlu0 %1559
        %1561 = vrot.lane.b32.xlu0 %v1481, 8
        %v1562 = vpop.permute.xlu0 %1561
        %1563 = vrot.lane.b32.xlu0 %v1482, 8
        %v1564 = vpop.permute.xlu0 %1563
        %1565 = vrot.lane.b32.xlu0 %v1483, 8
        %v1566 = vpop.permute.xlu0 %1565
        %1567 = vrot.lane.b32.xlu0 %v1484, 8
        %v1568 = vpop.permute.xlu0 %1567
        %1569 = vrot.lane.b32.xlu0 %v1485, 8
        %v1570 = vpop.permute.xlu0 %1569
        %1571 = vrot.lane.b32.xlu0 %v1486, 8
        %v1572 = vpop.permute.xlu0 %1571
        %1573 = vrot.lane.b32.xlu0 %v1487, 8
        %v1574 = vpop.permute.xlu0 %1573
        %1575 = vrot.lane.b32.xlu0 %v1488, 8
        %v1576 = vpop.permute.xlu0 %1575
        %1577 = vrot.lane.b32.xlu0 %v1489, 8
        %v1578 = vpop.permute.xlu0 %1577
        %1579 = vrot.lane.b32.xlu0 %v1490, 8
        %v1580 = vpop.permute.xlu0 %1579
        %1581 = vrot.lane.b32.xlu0 %v1491, 8
        %v1582 = vpop.permute.xlu0 %1581
        %1583 = vrot.lane.b32.xlu0 %v1492, 8
        %v1584 = vpop.permute.xlu0 %1583
        %1585 = vrot.lane.b32.xlu0 %v1493, 8
        %v1586 = vpop.permute.xlu0 %1585
        %1587 = vrot.lane.b32.xlu0 %v1494, 8
        %v1588 = vpop.permute.xlu0 %1587
        %1589 = vrot.lane.b32.xlu0 %v1495, 8
        %v1590 = vpop.permute.xlu0 %1589
        %1591 = vrot.lane.b32.xlu0 %v1496, 8
        %v1592 = vpop.permute.xlu0 %1591
        %v1625 = vsel %vm331, %v278, %v1530
        %v1626 = vsel %vm331, %v279, %v1532
        %v1627 = vsel %vm331, %v280, %v1534
        %v1628 = vsel %vm331, %v281, %v1536
        %v1629 = vsel %vm331, %v282, %v1538
        %v1630 = vsel %vm331, %v283, %v1540
        %v1631 = vsel %vm331, %v284, %v1542
        %v1632 = vsel %vm331, %v285, %v1544
        %v1633 = vsel %vm331, %v286, %v1546
        %v1634 = vsel %vm331, %v287, %v1548
        %v1635 = vsel %vm331, %v288, %v1550
        %v1636 = vsel %vm331, %v289, %v1552
        %v1637 = vsel %vm331, %v290, %v1554
        %v1638 = vsel %vm331, %v291, %v1556
        %v1639 = vsel %vm331, %v292, %v1558
        %v1640 = vsel %vm331, %v293, %v1560
        %v1641 = vsel %vm331, %v294, %v1562
        %v1642 = vsel %vm331, %v295, %v1564
        %v1643 = vsel %vm331, %v296, %v1566
        %v1644 = vsel %vm331, %v297, %v1568
        %v1645 = vsel %vm331, %v298, %v1570
        %v1646 = vsel %vm331, %v299, %v1572
        %v1647 = vsel %vm331, %v300, %v1574
        %v1648 = vsel %vm331, %v301, %v1576
        %v1649 = vsel %vm331, %v302, %v1578
        %v1650 = vsel %vm331, %v303, %v1580
        %v1651 = vsel %vm331, %v304, %v1582
        %v1652 = vsel %vm331, %v305, %v1584
        %v1653 = vsel %vm331, %v306, %v1586
        %v1654 = vsel %vm331, %v307, %v1588
        %v1655 = vsel %vm331, %v308, %v1590
        %v1656 = vsel %vm331, %v309, %v1592
        %v1657 = vpack.c.bf16 %v1626, %v1625
        %v1658 = vpack.c.bf16 %v1628, %v1627
        %v1659 = vpack.c.bf16 %v1630, %v1629
        %v1660 = vpack.c.bf16 %v1632, %v1631
        %v1661 = vpack.c.bf16 %v1634, %v1633
        %v1662 = vpack.c.bf16 %v1636, %v1635
        %v1663 = vpack.c.bf16 %v1638, %v1637
        %v1664 = vpack.c.bf16 %v1640, %v1639
        %v1665 = vpack.c.bf16 %v1642, %v1641
        %v1666 = vpack.c.bf16 %v1644, %v1643
        %v1667 = vpack.c.bf16 %v1646, %v1645
        %v1668 = vpack.c.bf16 %v1648, %v1647
        %v1669 = vpack.c.bf16 %v1650, %v1649
        %v1670 = vpack.c.bf16 %v1652, %v1651
        %v1671 = vpack.c.bf16 %v1654, %v1653
        %v1672 = vpack.c.bf16 %v1656, %v1655
        %v1673 = vld [vmem:[%s5] sm:$0xf]
        %v1674 = vld [vmem:[%s5 + $0x4] sm:$0x3]
        %v1677 = vunpack.c.l.b16 %v1673
        %v1678 = vunpack.c.l.b16 %v1674
        %v1679 = vpack.c.b16 %v1678, %v1677
        %vm1680 = vcmask 97280
        %v1682 = vsel %vm1680, %v1657, 0
        %v1685 = vsel %vm1680, %v1658, 0
        %v1688 = vsel %vm1680, %v1659, 0
        %v1691 = vsel %vm1680, %v1660, 0
        %v1694 = vsel %vm1680, %v1661, 0
        %v1697 = vsel %vm1680, %v1662, 0
        %v1700 = vsel %vm1680, %v1663, 0
        %v1703 = vsel %vm1680, %v1664, 0
        %v1706 = vsel %vm1680, %v1665, 0
        %v1709 = vsel %vm1680, %v1666, 0
        %v1712 = vsel %vm1680, %v1667, 0
        %v1715 = vsel %vm1680, %v1668, 0
        %v1718 = vsel %vm1680, %v1669, 0
        %v1721 = vsel %vm1680, %v1670, 0
        %v1724 = vsel %vm1680, %v1671, 0
        %v1727 = vsel %vm1680, %v1672, 0
        %vm1729 = vcmask 1045504
        %v1731 = vsel %vm1729, %v1679, 0
        %1733 = vmatpush.bf16.msra.mxu0 0
        %1734 = vmatpush.bf16.msra.mxu0 0
        %1735 = vmatpush.bf16.msra.mxu0 0
        %1736 = vmatpush.bf16.msra.mxu0 0
        %1737 = vmatpush.bf16.msra.mxu0 0
        %1738 = vmatpush.bf16.msra.mxu0 0
        %1739 = vmatpush.bf16.msra.mxu0 0
        %1740 = vmatpush.bf16.msra.mxu0 %v1731
        %1741 = vmatmul.bf16.gmra.mxu0 %v1682
        %v1742 = vpop.f32.mrf.mxu0
        %v1743 = vadd.f32 0.0, %v1742
        %v1744 = vpop.f32.mrf.mxu0
        %v1745 = vadd.f32 0.0, %v1744
        %1746 = vmatmul.bf16.gmra.mxu0 %v1685
        %v1747 = vpop.f32.mrf.mxu0
        %v1748 = vadd.f32 0.0, %v1747
        %v1749 = vpop.f32.mrf.mxu0
        %v1750 = vadd.f32 0.0, %v1749
        %1751 = vmatmul.bf16.gmra.mxu0 %v1688
        %v1752 = vpop.f32.mrf.mxu0
        %v1753 = vadd.f32 0.0, %v1752
        %v1754 = vpop.f32.mrf.mxu0
        %v1755 = vadd.f32 0.0, %v1754
        %1756 = vmatmul.bf16.gmra.mxu0 %v1691
        %v1757 = vpop.f32.mrf.mxu0
        %v1758 = vadd.f32 0.0, %v1757
        %v1759 = vpop.f32.mrf.mxu0
        %v1760 = vadd.f32 0.0, %v1759
        %1761 = vmatmul.bf16.gmra.mxu0 %v1694
        %v1762 = vpop.f32.mrf.mxu0
        %v1763 = vadd.f32 0.0, %v1762
        %v1764 = vpop.f32.mrf.mxu0
        %v1765 = vadd.f32 0.0, %v1764
        %1766 = vmatmul.bf16.gmra.mxu0 %v1697
        %v1767 = vpop.f32.mrf.mxu0
        %v1768 = vadd.f32 0.0, %v1767
        %v1769 = vpop.f32.mrf.mxu0
        %v1770 = vadd.f32 0.0, %v1769
        %1771 = vmatmul.bf16.gmra.mxu0 %v1700
        %v1772 = vpop.f32.mrf.mxu0
        %v1773 = vadd.f32 0.0, %v1772
        %v1774 = vpop.f32.mrf.mxu0
        %v1775 = vadd.f32 0.0, %v1774
        %1776 = vmatmul.bf16.gmra.mxu0 %v1703
        %v1777 = vpop.f32.mrf.mxu0
        %v1778 = vadd.f32 0.0, %v1777
        %v1779 = vpop.f32.mrf.mxu0
        %v1780 = vadd.f32 0.0, %v1779
        %1781 = vmatmul.bf16.gmra.mxu0 %v1706
        %v1782 = vpop.f32.mrf.mxu0
        %v1783 = vadd.f32 0.0, %v1782
        %v1784 = vpop.f32.mrf.mxu0
        %v1785 = vadd.f32 0.0, %v1784
        %1786 = vmatmul.bf16.gmra.mxu0 %v1709
        %v1787 = vpop.f32.mrf.mxu0
        %v1788 = vadd.f32 0.0, %v1787
        %v1789 = vpop.f32.mrf.mxu0
        %v1790 = vadd.f32 0.0, %v1789
        %1791 = vmatmul.bf16.gmra.mxu0 %v1712
        %v1792 = vpop.f32.mrf.mxu0
        %v1793 = vadd.f32 0.0, %v1792
        %v1794 = vpop.f32.mrf.mxu0
        %v1795 = vadd.f32 0.0, %v1794
        %1796 = vmatmul.bf16.gmra.mxu0 %v1715
        %v1797 = vpop.f32.mrf.mxu0
        %v1798 = vadd.f32 0.0, %v1797
        %v1799 = vpop.f32.mrf.mxu0
        %v1800 = vadd.f32 0.0, %v1799
        %1801 = vmatmul.bf16.gmra.mxu0 %v1718
        %v1802 = vpop.f32.mrf.mxu0
        %v1803 = vadd.f32 0.0, %v1802
        %v1804 = vpop.f32.mrf.mxu0
        %v1805 = vadd.f32 0.0, %v1804
        %1806 = vmatmul.bf16.gmra.mxu0 %v1721
        %v1807 = vpop.f32.mrf.mxu0
        %v1808 = vadd.f32 0.0, %v1807
        %v1809 = vpop.f32.mrf.mxu0
        %v1810 = vadd.f32 0.0, %v1809
        %1811 = vmatmul.bf16.gmra.mxu0 %v1724
        %v1812 = vpop.f32.mrf.mxu0
        %v1813 = vadd.f32 0.0, %v1812
        %v1814 = vpop.f32.mrf.mxu0
        %v1815 = vadd.f32 0.0, %v1814
        %1816 = vmatmul.bf16.gmra.mxu0 %v1727
        %v1817 = vpop.f32.mrf.mxu0
        %v1818 = vadd.f32 0.0, %v1817
        %v1819 = vpop.f32.mrf.mxu0
        %v1820 = vadd.f32 0.0, %v1819
        %1821 = vdwg.mxu0
        %v1822 = vld [vmem:[%s6] sm:$0x1]
        %v1824 = vperm.slane %v1822, 0
        %v1826 = vadd.f32 %v1743, %v1824
        %v1827 = vadd.f32 %v1745, %v1824
        %v1828 = vadd.f32 %v1748, %v1824
        %v1829 = vadd.f32 %v1750, %v1824
        %v1830 = vadd.f32 %v1753, %v1824
        %v1831 = vadd.f32 %v1755, %v1824
        %v1832 = vadd.f32 %v1758, %v1824
        %v1833 = vadd.f32 %v1760, %v1824
        %v1834 = vadd.f32 %v1763, %v1824
        %v1835 = vadd.f32 %v1765, %v1824
        %v1836 = vadd.f32 %v1768, %v1824
        %v1837 = vadd.f32 %v1770, %v1824
        %v1838 = vadd.f32 %v1773, %v1824
        %v1839 = vadd.f32 %v1775, %v1824
        %v1840 = vadd.f32 %v1778, %v1824
        %v1841 = vadd.f32 %v1780, %v1824
        %v1842 = vadd.f32 %v1783, %v1824
        %v1843 = vadd.f32 %v1785, %v1824
        %v1844 = vadd.f32 %v1788, %v1824
        %v1845 = vadd.f32 %v1790, %v1824
        %v1846 = vadd.f32 %v1793, %v1824
        %v1847 = vadd.f32 %v1795, %v1824
        %v1848 = vadd.f32 %v1798, %v1824
        %v1849 = vadd.f32 %v1800, %v1824
        %v1850 = vadd.f32 %v1803, %v1824
        %v1851 = vadd.f32 %v1805, %v1824
        %v1852 = vadd.f32 %v1808, %v1824
        %v1853 = vadd.f32 %v1810, %v1824
        %v1854 = vadd.f32 %v1813, %v1824
        %v1855 = vadd.f32 %v1815, %v1824
        %v1856 = vadd.f32 %v1818, %v1824
        %v1857 = vadd.f32 %v1820, %v1824
        %v1858 = vmax.f32 %v1826, 0.0
        %v1859 = vmax.f32 %v1827, 0.0
        %v1860 = vmax.f32 %v1828, 0.0
        %v1861 = vmax.f32 %v1829, 0.0
        %v1862 = vmax.f32 %v1830, 0.0
        %v1863 = vmax.f32 %v1831, 0.0
        %v1864 = vmax.f32 %v1832, 0.0
        %v1865 = vmax.f32 %v1833, 0.0
        %v1866 = vmax.f32 %v1834, 0.0
        %v1867 = vmax.f32 %v1835, 0.0
        %v1868 = vmax.f32 %v1836, 0.0
        %v1869 = vmax.f32 %v1837, 0.0
        %v1870 = vmax.f32 %v1838, 0.0
        %v1871 = vmax.f32 %v1839, 0.0
        %v1872 = vmax.f32 %v1840, 0.0
        %v1873 = vmax.f32 %v1841, 0.0
        %v1874 = vmax.f32 %v1842, 0.0
        %v1875 = vmax.f32 %v1843, 0.0
        %v1876 = vmax.f32 %v1844, 0.0
        %v1877 = vmax.f32 %v1845, 0.0
        %v1878 = vmax.f32 %v1846, 0.0
        %v1879 = vmax.f32 %v1847, 0.0
        %v1880 = vmax.f32 %v1848, 0.0
        %v1881 = vmax.f32 %v1849, 0.0
        %v1882 = vmax.f32 %v1850, 0.0
        %v1883 = vmax.f32 %v1851, 0.0
        %v1884 = vmax.f32 %v1852, 0.0
        %v1885 = vmax.f32 %v1853, 0.0
        %v1886 = vmax.f32 %v1854, 0.0
        %v1887 = vmax.f32 %v1855, 0.0
        %v1888 = vmax.f32 %v1856, 0.0
        %v1889 = vmax.f32 %v1857, 0.0
        %v1890 = vlaneseq
        %v1891 = vand.u32 %v1890, 127
        %vm1892 = vcmp.lt.s32.totalorder %v1891, 0
        %v1893 = vsub.s32 0, %v1891
        %v1894 = vsel %vm1892, %v1893, %v1891
        %v1895 = vshrl.u32 %v1894, 1
        %v1896 = vand.u32 %v1894, 1
        %v1897 = vsub.s32 0, %v1896
        %v1898 = vsel %vm1892, %v1897, %v1896
        %vm1899 = vcmp.ne.s32.totalorder %v1898, 0
        %vm1900 = vcmp.lt.s32.totalorder %v1898, 0
        %vm1901 = vmand %vm1900, %vm1899
        %v1902 = vadd.s32 %v1898, 2
        %v1903 = vsel %vm1901, %v1902, %v1898
        %vm1904 = vcmp.eq.s32.totalorder %v1903, 1
        %v1905 = vsel %vm1904, %v1858, %v1743
        %v1906 = vsel %vm1904, %v1859, %v1745
        %v1907 = vsel %vm1904, %v1860, %v1748
        %v1908 = vsel %vm1904, %v1861, %v1750
        %v1909 = vsel %vm1904, %v1862, %v1753
        %v1910 = vsel %vm1904, %v1863, %v1755
        %v1911 = vsel %vm1904, %v1864, %v1758
        %v1912 = vsel %vm1904, %v1865, %v1760
        %v1913 = vsel %vm1904, %v1866, %v1763
        %v1914 = vsel %vm1904, %v1867, %v1765
        %v1915 = vsel %vm1904, %v1868, %v1768
        %v1916 = vsel %vm1904, %v1869, %v1770
        %v1917 = vsel %vm1904, %v1870, %v1773
        %v1918 = vsel %vm1904, %v1871, %v1775
        %v1919 = vsel %vm1904, %v1872, %v1778
        %v1920 = vsel %vm1904, %v1873, %v1780
        %v1921 = vsel %vm1904, %v1874, %v1783
        %v1922 = vsel %vm1904, %v1875, %v1785
        %v1923 = vsel %vm1904, %v1876, %v1788
        %v1924 = vsel %vm1904, %v1877, %v1790
        %v1925 = vsel %vm1904, %v1878, %v1793
        %v1926 = vsel %vm1904, %v1879, %v1795
        %v1927 = vsel %vm1904, %v1880, %v1798
        %v1928 = vsel %vm1904, %v1881, %v1800
        %v1929 = vsel %vm1904, %v1882, %v1803
        %v1930 = vsel %vm1904, %v1883, %v1805
        %v1931 = vsel %vm1904, %v1884, %v1808
        %v1932 = vsel %vm1904, %v1885, %v1810
        %v1933 = vsel %vm1904, %v1886, %v1813
        %v1934 = vsel %vm1904, %v1887, %v1815
        %v1935 = vsel %vm1904, %v1888, %v1818
        %v1936 = vsel %vm1904, %v1889, %v1820
        %1939 = vrot.lane.b32.xlu0 %v1907, 8
        %v1940 = vpop.permute.xlu0 %1939
        %1941 = vrot.lane.b32.xlu0 %v1908, 8
        %v1942 = vpop.permute.xlu0 %1941
        %1947 = vrot.lane.b32.xlu0 %v1909, 16
        %v1948 = vpop.permute.xlu0 %1947
        %1949 = vrot.lane.b32.xlu0 %v1910, 16
        %v1950 = vpop.permute.xlu0 %1949
        %1955 = vrot.lane.b32.xlu0 %v1911, 24
        %v1956 = vpop.permute.xlu0 %1955
        %1957 = vrot.lane.b32.xlu0 %v1912, 24
        %v1958 = vpop.permute.xlu0 %1957
        %1963 = vrot.lane.b32.xlu0 %v1913, 32
        %v1964 = vpop.permute.xlu0 %1963
        %1965 = vrot.lane.b32.xlu0 %v1914, 32
        %v1966 = vpop.permute.xlu0 %1965
        %1971 = vrot.lane.b32.xlu0 %v1915, 40
        %v1972 = vpop.permute.xlu0 %1971
        %1973 = vrot.lane.b32.xlu0 %v1916, 40
        %v1974 = vpop.permute.xlu0 %1973
        %1979 = vrot.lane.b32.xlu0 %v1917, 48
        %v1980 = vpop.permute.xlu0 %1979
        %1981 = vrot.lane.b32.xlu0 %v1918, 48
        %v1982 = vpop.permute.xlu0 %1981
        %1987 = vrot.lane.b32.xlu0 %v1919, 56
        %v1988 = vpop.permute.xlu0 %1987
        %1989 = vrot.lane.b32.xlu0 %v1920, 56
        %v1990 = vpop.permute.xlu0 %1989
        %1995 = vrot.lane.b32.xlu0 %v1921, 64
        %v1996 = vpop.permute.xlu0 %1995
        %1997 = vrot.lane.b32.xlu0 %v1922, 64
        %v1998 = vpop.permute.xlu0 %1997
        %2003 = vrot.lane.b32.xlu0 %v1923, 72
        %v2004 = vpop.permute.xlu0 %2003
        %2005 = vrot.lane.b32.xlu0 %v1924, 72
        %v2006 = vpop.permute.xlu0 %2005
        %2011 = vrot.lane.b32.xlu0 %v1925, 80
        %v2012 = vpop.permute.xlu0 %2011
        %2013 = vrot.lane.b32.xlu0 %v1926, 80
        %v2014 = vpop.permute.xlu0 %2013
        %2019 = vrot.lane.b32.xlu0 %v1927, 88
        %v2020 = vpop.permute.xlu0 %2019
        %2021 = vrot.lane.b32.xlu0 %v1928, 88
        %v2022 = vpop.permute.xlu0 %2021
        %2027 = vrot.lane.b32.xlu0 %v1929, 96
        %v2028 = vpop.permute.xlu0 %2027
        %2029 = vrot.lane.b32.xlu0 %v1930, 96
        %v2030 = vpop.permute.xlu0 %2029
        %2035 = vrot.lane.b32.xlu0 %v1931, 104
        %v2036 = vpop.permute.xlu0 %2035
        %2037 = vrot.lane.b32.xlu0 %v1932, 104
        %v2038 = vpop.permute.xlu0 %2037
        %2043 = vrot.lane.b32.xlu0 %v1933, 112
        %v2044 = vpop.permute.xlu0 %2043
        %2045 = vrot.lane.b32.xlu0 %v1934, 112
        %v2046 = vpop.permute.xlu0 %2045
        %2051 = vrot.lane.b32.xlu0 %v1935, 120
        %v2052 = vpop.permute.xlu0 %2051
        %2053 = vrot.lane.b32.xlu0 %v1936, 120
        %v2054 = vpop.permute.xlu0 %2053
        %v2057 = vsel %vm331, %v1905, %v1940
        %v2058 = vsel %vm331, %v1906, %v1942
        %vm2059 = vcmask 130048
        %v2060 = vsel %vm2059, %v2057, %v1948
        %v2061 = vsel %vm2059, %v2058, %v1950
        %vm2062 = vcmask 195584
        %v2063 = vsel %vm2062, %v2060, %v1956
        %v2064 = vsel %vm2062, %v2061, %v1958
        %vm2065 = vcmask 261120
        %v2066 = vsel %vm2065, %v2063, %v1964
        %v2067 = vsel %vm2065, %v2064, %v1966
        %vm2068 = vcmask 326656
        %v2069 = vsel %vm2068, %v2066, %v1972
        %v2070 = vsel %vm2068, %v2067, %v1974
        %vm2071 = vcmask 392192
        %v2072 = vsel %vm2071, %v2069, %v1980
        %v2073 = vsel %vm2071, %v2070, %v1982
        %vm2074 = vcmask 457728
        %v2075 = vsel %vm2074, %v2072, %v1988
        %v2076 = vsel %vm2074, %v2073, %v1990
        %vm2077 = vcmask 523264
        %v2078 = vsel %vm2077, %v2075, %v1996
        %v2079 = vsel %vm2077, %v2076, %v1998
        %vm2080 = vcmask 588800
        %v2081 = vsel %vm2080, %v2078, %v2004
        %v2082 = vsel %vm2080, %v2079, %v2006
        %vm2083 = vcmask 654336
        %v2084 = vsel %vm2083, %v2081, %v2012
        %v2085 = vsel %vm2083, %v2082, %v2014
        %vm2086 = vcmask 719872
        %v2087 = vsel %vm2086, %v2084, %v2020
        %v2088 = vsel %vm2086, %v2085, %v2022
        %vm2089 = vcmask 785408
        %v2090 = vsel %vm2089, %v2087, %v2028
        %v2091 = vsel %vm2089, %v2088, %v2030
        %vm2092 = vcmask 850944
        %v2093 = vsel %vm2092, %v2090, %v2036
        %v2094 = vsel %vm2092, %v2091, %v2038
        %vm2095 = vcmask 916480
        %v2096 = vsel %vm2095, %v2093, %v2044
        %v2097 = vsel %vm2095, %v2094, %v2046
        %vm2098 = vcmask 982016
        %v2099 = vsel %vm2098, %v2096, %v2052
        %v2100 = vsel %vm2098, %v2097, %v2054
        %2101 = vst [vmem:[%s271] sm:$0xff] %v2099
        %2102 = vst [vmem:[%s271 + $0x8] sm:$0xff] %v2100
        %s2103 = sand.u32 %s181, 1
        %s2104 = scalar_lea.sflag [#allocation4], %s2103
        %s2105 = sand.u32 %s181, 1
        %s2106 = smul.addr %s2105, 16
        %s2107 = scalar_lea.vmem [#allocation3], %s2106
        // Predicated region
        $region49: #{tpu_custom_call.1} parent=47 // pred_check
          %p2108 = pneg %p191
        $region50: #{tpu_custom_call.1} parent=47 // pred_check_branch
          %2110 = sbr.rel (%p2108) target = $region52
        $region51: #{tpu_custom_call.1} parent=47 // pred_region
          %2112 = vsyncadd %s2104, 0
          %s2113 = smul.addr %s21, 2
          %s2114 = smul.addr %s2113, 8
          %s2115 = scalar_lea.hbm %s7, %s2114
          %s2116 = sshll.u32 %s2107, 4
          %s2117 = int_to_ptr.vmem [resolvable:$true] %s2116
          %s2118 = sshll.u32 %s2115, 4
          %s2119 = int_to_ptr.hbm [resolvable:$true] %s2118
          %2124 = dma.vmem_to_hbm [thread:$0]  %s2117, 256, %s2119, %s2104, 128, 128, 8
        $region52: #{tpu_custom_call.1} parent=47 // pred_fallthru
          _
      $region48: #{tpu_custom_call.1} parent=5 // pred_fallthru
        _
      %p2125 = scmp.le.s32.totalorder 2, %s16
      // Predicated region
      $region53: #{tpu_custom_call.1} parent=5 // pred_check
        %p2126 = pneg %p2125
      $region54: #{tpu_custom_call.1} parent=5 // pred_check_branch
        %2128 = sbr.rel (%p2126) target = $region56
      $region55: #{tpu_custom_call.1} parent=5 // pred_region
        %s2129 = ssub.s32 %s16, 2
        // Predicated region
        $region57: #{tpu_custom_call.1} parent=55 // pred_check
          %p2130 = pneg %p197
        $region58: #{tpu_custom_call.1} parent=55 // pred_check_branch
          %2132 = sbr.rel (%p2130) target = $region60
        $region59: #{tpu_custom_call.1} parent=55 // pred_region
          %s2133 = sand.u32 %s182, 1
          %s2134 = scalar_lea.sflag [#allocation4], %s2133
          %s2135 = sand.u32 %s182, 1
          %s2136 = smul.addr %s2135, 16
          %s2137 = scalar_lea.vmem [#allocation3], %s2136
          %2139 = dma.done %s2134, 256
        $region60: #{tpu_custom_call.1} parent=55 // pred_fallthru
          _
      $region56: #{tpu_custom_call.1} parent=5 // pred_fallthru
        _
    $region6: #{tpu_custom_call.1} parent=1 // loop_footer
      %s20 = sadd.s32 1, %s16
    $region7: #{tpu_custom_call.1} parent=1 // loop_footer_branch
      %15 = sbr.rel target = $region3
    $region8: #{tpu_custom_call.1} parent=1 // loop_exit
      _
    %2140 = vsyncpa [#allocation4], 1
    %s2141 = scalar_lea.sflag [#allocation4], 1
    %2142 = vsyncpa %s2141, 1

</llo_original>
